<compile_context>
chip_gen: v5e
topology: v5e:2x2
jax: 0.10.0
libtpu: 0.0.40
codegen_flags: <defaults>
</compile_context>

<pallas_src>
import numpy as np
import jax
import jax.numpy as jnp
from jax import lax
from jax.experimental import pallas as pl
from jax.experimental.pallas import tpu as pltpu

# ------------------------- model hyper-parameters (small) ---------------------
SEQ_LEN = 16            # args.sequence_length
EMB_DIM = 8             # args.embedding_dim
FILTER_SIZES = (2, 3)   # args.filter_sizes
NUM_FILTERS = 4         # args.num_filters
POOLING_TYPE = "max"    # args.pooling_type -> nn.MaxPool1d(2, stride=1)
HIDDEN_DIMS = 32        # args.hidden_dims
OUTPUT_DIM = 10         # set in add_data from Y_trn.shape[1]
VOCAB_SIZE = 50
BATCH = 2

LANE = 128              # TPU lane width: all kernel lane dims padded to this
SUBLANE = 8
B_PAD = ((BATCH + SUBLANE - 1) // SUBLANE) * SUBLANE   # 8


def _pick_tile_b(b_pad):
    # Grow the per-step tile with batch; once batch is non-trivial keep >=2 grid steps so
    # v7x megacore sharding has work for both TensorCores. Splits are multiples of 16 so
    # bf16 output blocks stay tile-aligned.
    for t in (2048, 1024, 512, 256, 128, 64, 32, 16):
        if b_pad % t == 0 and b_pad // t >= 2:
            return t
    return b_pad


TILE_B = _pick_tile_b(B_PAD)      # 8 at this toy size (grid=(1,)); scales with batch


def out_size(l_in, kernel_size, padding=0, dilation=1, stride=1):
    a = l_in + 2 * padding - dilation * (kernel_size - 1) - 1
    return int(a / stride) + 1


L_OUTS = tuple(out_size(SEQ_LEN, f, stride=2) for f in FILTER_SIZES)   # (8, 7)
CONV_WIDTHS = tuple(NUM_FILTERS * lo for lo in L_OUTS)                 # (32, 28)
CONV_TOTAL = sum(CONV_WIDTHS)                                          # 60
FINAL_IN = sum(w - 1 for w in CONV_WIDTHS)                             # 58
K_DIM = EMB_DIM * SEQ_LEN                                              # 128
G_ROWS = SEQ_LEN * VOCAB_SIZE                                          # 800
G_ROWS_PAD = ((G_ROWS + SUBLANE - 1) // SUBLANE) * SUBLANE             # 800

# Pooled column -> feature index mapping (valid pool positions only).
_offsets = np.cumsum((0,) + CONV_WIDTHS)                     # [0, 32, 60]
VALID_POOL_COLS = np.concatenate(
    [np.arange(_offsets[i], _offsets[i + 1] - 1) for i in range(len(FILTER_SIZES))]
).astype(np.int32)                                           # length FINAL_IN = 58

# --- static safety net for the roll-based maxpool (review correctness concern) ---
# Roll maxpool is valid only because: (a) conv lanes >= CONV_TOTAL are exactly zero
# (G / conv-bias padded with zeros), so the wrap column max(conv[:,127], conv[:,0]) lives
# in the dead region; (b) branch-boundary / last-of-branch / padded pooled columns are
# excluded from VALID_POOL_COLS and hit zero rows of the hidden weight.
assert CONV_TOTAL < LANE
assert HIDDEN_DIMS <= LANE and OUTPUT_DIM <= LANE
assert len(VALID_POOL_COLS) == FINAL_IN
assert VALID_POOL_COLS.max() == CONV_TOTAL - 2
_valid_set = set(VALID_POOL_COLS.tolist())
assert all((_offsets[i] - 1) not in _valid_set for i in range(1, len(_offsets)))


# --------------------------------- kernel -------------------------------------
def cnn_kernel(tok_ref, g_ref, wh_ref, wo_ref, bias_ref, out_ref, conv_ref):
    # tok_ref : (B_PAD, SEQ_LEN) int32, SMEM (scalar prefetch)
    # g_ref   : (G_ROWS_PAD, LANE) f32   fused embedding x conv-Toeplitz table
    # wh_ref  : (LANE, LANE) bf16        hidden weight (rows scattered to valid pool cols)
    # wo_ref  : (LANE, LANE) bf16        output weight
    # bias_ref: (8, LANE) f32            row0=conv bias, row1=hidden bias, row2=out bias
    # out_ref : (TILE_B, LANE) bf16
    # conv_ref: (TILE_B, LANE) f32 VMEM scratch
    i = pl.program_id(0)
    bc = bias_ref[0:1, :]
    bh = bias_ref[1:2, :]
    bo = bias_ref[2:3, :]

    # ---- fused embedding gather + Conv1d (all filter sizes at once) ----
    # conv[b, :] = bc + sum_l G[l*V + tok[b, l], :]   (f32 accumulate, full-lane rows)
    # TODO(synk): at very large TILE_B this scalar-driven gather loop becomes the
    # bottleneck; switch to a vectorized gather (or XLA-side gather) for huge batches.
    def gather_row(b, carry):
        row = i * TILE_B + b
        acc = bc
        for l in range(SEQ_LEN):                       # static unroll, 16 positions
            tok = tok_ref[row, l]
            acc = acc + g_ref[pl.ds(l * VOCAB_SIZE + tok, 1), :]
        conv_ref[pl.ds(b, 1), :] = acc
        return carry

    lax.fori_loop(0, TILE_B, gather_row, 0, unroll=TILE_B <= 32)

    conv = conv_ref[...]                                # (TILE_B, LANE) f32

    # MaxPool1d(kernel=2, stride=1): compare against the left-rolled copy (XLU roll).
    # rolled[:, i] = conv[:, i+1 mod 128]; invalid pooled columns hit zero rows of wh.
    pooled = jnp.maximum(conv, pltpu.roll(conv, shift=LANE - 1, axis=1))

    # Hidden Linear + ReLU (bf16 MXU operands, f32 accumulation, f32 elementwise).
    h = jnp.dot(pooled.astype(jnp.bfloat16), wh_ref[...],
                preferred_element_type=jnp.float32) + bh
    h = jnp.maximum(h, 0.0)

    # Output Linear + sigmoid (exp + approx reciprocal both on the EUP slot).
    logits = jnp.dot(h.astype(jnp.bfloat16), wo_ref[...],
                     preferred_element_type=jnp.float32) + bo
    e = jnp.exp(-logits)
    out_ref[...] = pl.reciprocal(1.0 + e, approx=True).astype(out_ref.dtype)


# ------------------- one-time weight preparation (host numpy) ------------------
def _conv_as_dense_np(W, b, fsz, l_out):
    """Dense Toeplitz form of Conv1d(E->F, kernel=fsz, stride=2) on a length-L input.

    dense[e*L + 2*t + k, f*l_out + t] = W[f, e, k];  bias_flat[f*l_out + t] = b[f].
    """
    W = np.asarray(W, np.float32)
    b = np.asarray(b, np.float32)
    F, E, _ = W.shape
    dense = np.zeros((K_DIM, F * l_out), np.float32)
    f_i, e_i, k_i, t_i = np.meshgrid(np.arange(F), np.arange(E), np.arange(fsz),
                                     np.arange(l_out), indexing="ij")
    rows = (e_i * SEQ_LEN + 2 * t_i + k_i).ravel()
    cols = (f_i * l_out + t_i).ravel()
    dense[rows, cols] = W[f_i.ravel(), e_i.ravel(), k_i.ravel()]
    return dense, np.repeat(b, l_out)


def prepare_kernel_params(params):
    """Called ONCE at init: fold embedding+convs into the gather table, pad, cast."""
    emb = np.asarray(params["embedding"], np.float32)                  # (V, E)

    blocks, biases = [], []
    for fsz, l_out, (W, b) in zip(FILTER_SIZES, L_OUTS, params["convs"]):
        d, bf = _conv_as_dense_np(W, b, fsz, l_out)
        blocks.append(d)
        biases.append(bf)
    wc = np.concatenate(blocks, axis=1)                                # (128, 60)
    wc = np.pad(wc, ((0, 0), (0, LANE - CONV_TOTAL)))                  # (128, 128), zero pad
    bc = np.pad(np.concatenate(biases), (0, LANE - CONV_TOTAL))        # (128,)

    # Fused embedding x conv-Toeplitz gather table:
    #   G[l*V + v, c] = sum_e emb[v, e] * wc[e*L + l, c]
    wc3 = wc.reshape(EMB_DIM, SEQ_LEN, LANE)                           # [e, l, c]
    g = np.einsum("ve,elc->lvc", emb, wc3).reshape(G_ROWS, LANE)
    g = np.pad(g, ((0, G_ROWS_PAD - G_ROWS), (0, 0))).astype(np.float32)

    # Hidden layer: scatter Wh rows to the valid pooled columns; invalid pooled columns
    # (branch boundaries / padding / wrap) get zero rows -> replaces any masking.
    Wh, bh = params["hidden"]                                          # (H, 58), (H,)
    wh_rows = np.zeros((LANE, HIDDEN_DIMS), np.float32)
    wh_rows[VALID_POOL_COLS] = np.asarray(Wh, np.float32).T
    wh = np.pad(wh_rows, ((0, 0), (0, LANE - HIDDEN_DIMS)))            # (128, 128)

    Wo, bo = params["out"]                                             # (C, H), (C,)
    wo = np.pad(np.asarray(Wo, np.float32).T,
                ((0, LANE - HIDDEN_DIMS), (0, LANE - OUTPUT_DIM)))     # (128, 128)

    # Pack the three bias vectors into one (8, 128) f32 operand.
    bias = np.zeros((SUBLANE, LANE), np.float32)
    bias[0, :] = bc
    bias[1, :HIDDEN_DIMS] = np.asarray(bh, np.float32)
    bias[2, :OUTPUT_DIM] = np.asarray(bo, np.float32)

    return (jnp.asarray(g),                          # (800, 128) f32
            jnp.asarray(wh, dtype=jnp.bfloat16),     # (128, 128) bf16 MXU operand
            jnp.asarray(wo, dtype=jnp.bfloat16),     # (128, 128) bf16 MXU operand
            jnp.asarray(bias))                       # (8, 128) f32


# ------------------------------ jitted forward ----------------------------------
@jax.jit
def cnn_forward(tokens, g, wh, wo, bias):
    # dropout1(p=0.25) / dropout2(p=0.5): identity in eval mode.
    tok = jnp.pad(tokens.astype(jnp.int32), ((0, B_PAD - BATCH), (0, 0)))  # pad rows use token 0

    out_pad = pl.pallas_call(
        cnn_kernel,
        out_shape=jax.ShapeDtypeStruct((B_PAD, LANE), jnp.bfloat16),
        grid_spec=pltpu.PrefetchScalarGridSpec(
            num_scalar_prefetch=1,                       # tokens -> SMEM
            grid=(B_PAD // TILE_B,),
            in_specs=[
                pl.BlockSpec((G_ROWS_PAD, LANE), lambda i, tok: (0, 0)),  # fused emb*conv table
                pl.BlockSpec((LANE, LANE), lambda i, tok: (0, 0)),        # hidden weight
                pl.BlockSpec((LANE, LANE), lambda i, tok: (0, 0)),        # output weight
                pl.BlockSpec((SUBLANE, LANE), lambda i, tok: (0, 0)),     # packed biases
            ],
            out_specs=pl.BlockSpec((TILE_B, LANE), lambda i, tok: (i, 0)),
            scratch_shapes=[pltpu.VMEM((TILE_B, LANE), jnp.float32)],     # conv accumulator
        ),
        compiler_params=pltpu.CompilerParams(
            dimension_semantics=("parallel",)),          # batch tiles shard across TCs (v7x)
    )(tok, g, wh, wo, bias)

    return out_pad[:BATCH, :OUTPUT_DIM].astype(jnp.float32)


# ------------------------- deterministic parameter init ------------------------
def init_params(key):
    keys = jax.random.split(key, 3 + len(FILTER_SIZES))
    params = {}
    params["embedding"] = 0.5 * jax.random.normal(keys[0], (VOCAB_SIZE, EMB_DIM),
                                                  jnp.float32)
    convs = []
    for i, fsz in enumerate(FILTER_SIZES):
        kw, kb = jax.random.split(keys[1 + i])
        bound = 1.0 / np.sqrt(EMB_DIM * fsz)
        W = jax.random.uniform(kw, (NUM_FILTERS, EMB_DIM, fsz), jnp.float32,
                               -bound, bound)
        b = jax.random.uniform(kb, (NUM_FILTERS,), jnp.float32, -bound, bound)
        convs.append((W, b))
    params["convs"] = convs

    kh1, kh2 = jax.random.split(keys[-2])
    bound_h = 1.0 / np.sqrt(FINAL_IN)
    params["hidden"] = (
        jax.random.uniform(kh1, (HIDDEN_DIMS, FINAL_IN), jnp.float32, -bound_h, bound_h),
        jax.random.uniform(kh2, (HIDDEN_DIMS,), jnp.float32, -bound_h, bound_h),
    )
    ko1, ko2 = jax.random.split(keys[-1])
    bound_o = 1.0 / np.sqrt(HIDDEN_DIMS)
    params["out"] = (
        jax.random.uniform(ko1, (OUTPUT_DIM, HIDDEN_DIMS), jnp.float32, -bound_o, bound_o),
        jax.random.uniform(ko2, (OUTPUT_DIM,), jnp.float32, -bound_o, bound_o),
    )
    return params


# ------------------------------- pure-JAX reference ----------------------------
def reference_forward(tokens, params):
    emb = params["embedding"][tokens]
    x = jnp.transpose(emb, (0, 2, 1))
    outs = []
    for W, b in params["convs"]:
        conv = lax.conv_general_dilated(
            x, W, window_strides=(2,), padding="VALID",
            dimension_numbers=("NCH", "OIH", "NCH")) + b[None, :, None]
        flat = conv.reshape(conv.shape[0], -1)
        outs.append(jnp.maximum(flat[:, :-1], flat[:, 1:]))
    feat = jnp.concatenate(outs, axis=1)
    Wh, bh = params["hidden"]
    Wo, bo = params["out"]
    h = jax.nn.relu(feat @ Wh.T + bh)
    return jax.nn.sigmoid(h @ Wo.T + bo)


# ----------------------------------- main --------------------------------------
if __name__ == "__main__":
    key = jax.random.PRNGKey(0)
    k_tok, k_par = jax.random.split(key)
    tokens = jax.random.randint(k_tok, (BATCH, SEQ_LEN), 0, VOCAB_SIZE, dtype=jnp.int32)
    params = init_params(k_par)

    # Weight prep hoisted out of the forward path: done once, cached device arrays.
    prepared = prepare_kernel_params(params)

    out = jax.block_until_ready(cnn_forward(tokens, *prepared))
    ref = jax.block_until_ready(reference_forward(tokens, params))

    assert out.shape == (BATCH, OUTPUT_DIM)
    # bf16 MXU operands / bf16 output slab vs pure-f32 reference -> 2e-2 tolerance.
    np.testing.assert_allclose(np.asarray(out), np.asarray(ref), rtol=2e-2, atol=2e-2)

    print("KERNEL_OK")
</pallas_src>

<mosaic_0001>
module attributes {stable_mosaic.version = 11 : i64} {
  func.func @cnn_kernel(%arg0: i32, %arg1: memref<8x16xi32, #tpu.memory_space<smem>>, %arg2: memref<800x128xf32, #tpu.memory_space<vmem>>, %arg3: memref<128x128xbf16, #tpu.memory_space<vmem>>, %arg4: memref<128x128xbf16, #tpu.memory_space<vmem>>, %arg5: memref<8x128xf32, #tpu.memory_space<vmem>>, %arg6: memref<8x128xbf16, #tpu.memory_space<vmem>>, %arg7: memref<8x128xf32, #tpu.memory_space<vmem>>) attributes {dimension_semantics = [#tpu.dimension_semantics<parallel>], iteration_bounds = array<i64: 1>, scalar_prefetch = 1 : i64, scratch_operands = 1 : i64, tpu.core_type = #tpu.core_type<tc>, window_params = [{pipeline_mode = #tpu.pipeline_mode<synchronous>, transform_indices = @transform_0, window_bounds = array<i64: 800, 128>}, {pipeline_mode = #tpu.pipeline_mode<synchronous>, transform_indices = @transform_1, window_bounds = array<i64: 128, 128>}, {pipeline_mode = #tpu.pipeline_mode<synchronous>, transform_indices = @transform_2, window_bounds = array<i64: 128, 128>}, {pipeline_mode = #tpu.pipeline_mode<synchronous>, transform_indices = @transform_3, window_bounds = array<i64: 8, 128>}, {transform_indices = @transform_4, window_bounds = array<i64: 8, 128>}]} {
    %c0 = arith.constant 0 : index
    %c0_0 = arith.constant 0 : index
    %0 = vector.load %arg5[%c0, %c0_0] : memref<8x128xf32, #tpu.memory_space<vmem>>, vector<1x128xf32>
    %c1 = arith.constant 1 : index
    %c0_1 = arith.constant 0 : index
    %1 = vector.load %arg5[%c1, %c0_1] : memref<8x128xf32, #tpu.memory_space<vmem>>, vector<1x128xf32>
    %c2 = arith.constant 2 : index
    %c0_2 = arith.constant 0 : index
    %2 = vector.load %arg5[%c2, %c0_2] : memref<8x128xf32, #tpu.memory_space<vmem>>, vector<1x128xf32>
    %c0_i32 = arith.constant 0 : i32
    %c8_i32 = arith.constant 8 : i32
    %3 = arith.muli %arg0, %c8_i32 : i32
    %4 = arith.addi %3, %c0_i32 : i32
    %5 = arith.index_cast %4 : i32 to index
    %c0_3 = arith.constant 0 : index
    %6 = memref.load %arg1[%5, %c0_3] : memref<8x16xi32, #tpu.memory_space<smem>>
    %c0_i32_4 = arith.constant 0 : i32
    %7 = arith.addi %c0_i32_4, %6 : i32
    %8 = arith.index_cast %7 : i32 to index
    %c0_5 = arith.constant 0 : index
    %9 = vector.load %arg2[%8, %c0_5] : memref<800x128xf32, #tpu.memory_space<vmem>>, vector<1x128xf32>
    %10 = arith.addf %0, %9 : vector<1x128xf32>
    %11 = arith.index_cast %4 : i32 to index
    %c1_6 = arith.constant 1 : index
    %12 = memref.load %arg1[%11, %c1_6] : memref<8x16xi32, #tpu.memory_space<smem>>
    %c50_i32 = arith.constant 50 : i32
    %13 = arith.addi %c50_i32, %12 : i32
    %14 = arith.index_cast %13 : i32 to index
    %c0_7 = arith.constant 0 : index
    %15 = vector.load %arg2[%14, %c0_7] : memref<800x128xf32, #tpu.memory_space<vmem>>, vector<1x128xf32>
    %16 = arith.addf %10, %15 : vector<1x128xf32>
    %17 = arith.index_cast %4 : i32 to index
    %c2_8 = arith.constant 2 : index
    %18 = memref.load %arg1[%17, %c2_8] : memref<8x16xi32, #tpu.memory_space<smem>>
    %c100_i32 = arith.constant 100 : i32
    %19 = arith.addi %c100_i32, %18 : i32
    %20 = arith.index_cast %19 : i32 to index
    %c0_9 = arith.constant 0 : index
    %21 = vector.load %arg2[%20, %c0_9] : memref<800x128xf32, #tpu.memory_space<vmem>>, vector<1x128xf32>
    %22 = arith.addf %16, %21 : vector<1x128xf32>
    %23 = arith.index_cast %4 : i32 to index
    %c3 = arith.constant 3 : index
    %24 = memref.load %arg1[%23, %c3] : memref<8x16xi32, #tpu.memory_space<smem>>
    %c150_i32 = arith.constant 150 : i32
    %25 = arith.addi %c150_i32, %24 : i32
    %26 = arith.index_cast %25 : i32 to index
    %c0_10 = arith.constant 0 : index
    %27 = vector.load %arg2[%26, %c0_10] : memref<800x128xf32, #tpu.memory_space<vmem>>, vector<1x128xf32>
    %28 = arith.addf %22, %27 : vector<1x128xf32>
    %29 = arith.index_cast %4 : i32 to index
    %c4 = arith.constant 4 : index
    %30 = memref.load %arg1[%29, %c4] : memref<8x16xi32, #tpu.memory_space<smem>>
    %c200_i32 = arith.constant 200 : i32
    %31 = arith.addi %c200_i32, %30 : i32
    %32 = arith.index_cast %31 : i32 to index
    %c0_11 = arith.constant 0 : index
    %33 = vector.load %arg2[%32, %c0_11] : memref<800x128xf32, #tpu.memory_space<vmem>>, vector<1x128xf32>
    %34 = arith.addf %28, %33 : vector<1x128xf32>
    %35 = arith.index_cast %4 : i32 to index
    %c5 = arith.constant 5 : index
    %36 = memref.load %arg1[%35, %c5] : memref<8x16xi32, #tpu.memory_space<smem>>
    %c250_i32 = arith.constant 250 : i32
    %37 = arith.addi %c250_i32, %36 : i32
    %38 = arith.index_cast %37 : i32 to index
    %c0_12 = arith.constant 0 : index
    %39 = vector.load %arg2[%38, %c0_12] : memref<800x128xf32, #tpu.memory_space<vmem>>, vector<1x128xf32>
    %40 = arith.addf %34, %39 : vector<1x128xf32>
    %41 = arith.index_cast %4 : i32 to index
    %c6 = arith.constant 6 : index
    %42 = memref.load %arg1[%41, %c6] : memref<8x16xi32, #tpu.memory_space<smem>>
    %c300_i32 = arith.constant 300 : i32
    %43 = arith.addi %c300_i32, %42 : i32
    %44 = arith.index_cast %43 : i32 to index
    %c0_13 = arith.constant 0 : index
    %45 = vector.load %arg2[%44, %c0_13] : memref<800x128xf32, #tpu.memory_space<vmem>>, vector<1x128xf32>
    %46 = arith.addf %40, %45 : vector<1x128xf32>
    %47 = arith.index_cast %4 : i32 to index
    %c7 = arith.constant 7 : index
    %48 = memref.load %arg1[%47, %c7] : memref<8x16xi32, #tpu.memory_space<smem>>
    %c350_i32 = arith.constant 350 : i32
    %49 = arith.addi %c350_i32, %48 : i32
    %50 = arith.index_cast %49 : i32 to index
    %c0_14 = arith.constant 0 : index
    %51 = vector.load %arg2[%50, %c0_14] : memref<800x128xf32, #tpu.memory_space<vmem>>, vector<1x128xf32>
    %52 = arith.addf %46, %51 : vector<1x128xf32>
    %53 = arith.index_cast %4 : i32 to index
    %c8 = arith.constant 8 : index
    %54 = memref.load %arg1[%53, %c8] : memref<8x16xi32, #tpu.memory_space<smem>>
    %c400_i32 = arith.constant 400 : i32
    %55 = arith.addi %c400_i32, %54 : i32
    %56 = arith.index_cast %55 : i32 to index
    %c0_15 = arith.constant 0 : index
    %57 = vector.load %arg2[%56, %c0_15] : memref<800x128xf32, #tpu.memory_space<vmem>>, vector<1x128xf32>
    %58 = arith.addf %52, %57 : vector<1x128xf32>
    %59 = arith.index_cast %4 : i32 to index
    %c9 = arith.constant 9 : index
    %60 = memref.load %arg1[%59, %c9] : memref<8x16xi32, #tpu.memory_space<smem>>
    %c450_i32 = arith.constant 450 : i32
    %61 = arith.addi %c450_i32, %60 : i32
    %62 = arith.index_cast %61 : i32 to index
    %c0_16 = arith.constant 0 : index
    %63 = vector.load %arg2[%62, %c0_16] : memref<800x128xf32, #tpu.memory_space<vmem>>, vector<1x128xf32>
    %64 = arith.addf %58, %63 : vector<1x128xf32>
    %65 = arith.index_cast %4 : i32 to index
    %c10 = arith.constant 10 : index
    %66 = memref.load %arg1[%65, %c10] : memref<8x16xi32, #tpu.memory_space<smem>>
    %c500_i32 = arith.constant 500 : i32
    %67 = arith.addi %c500_i32, %66 : i32
    %68 = arith.index_cast %67 : i32 to index
    %c0_17 = arith.constant 0 : index
    %69 = vector.load %arg2[%68, %c0_17] : memref<800x128xf32, #tpu.memory_space<vmem>>, vector<1x128xf32>
    %70 = arith.addf %64, %69 : vector<1x128xf32>
    %71 = arith.index_cast %4 : i32 to index
    %c11 = arith.constant 11 : index
    %72 = memref.load %arg1[%71, %c11] : memref<8x16xi32, #tpu.memory_space<smem>>
    %c550_i32 = arith.constant 550 : i32
    %73 = arith.addi %c550_i32, %72 : i32
    %74 = arith.index_cast %73 : i32 to index
    %c0_18 = arith.constant 0 : index
    %75 = vector.load %arg2[%74, %c0_18] : memref<800x128xf32, #tpu.memory_space<vmem>>, vector<1x128xf32>
    %76 = arith.addf %70, %75 : vector<1x128xf32>
    %77 = arith.index_cast %4 : i32 to index
    %c12 = arith.constant 12 : index
    %78 = memref.load %arg1[%77, %c12] : memref<8x16xi32, #tpu.memory_space<smem>>
    %c600_i32 = arith.constant 600 : i32
    %79 = arith.addi %c600_i32, %78 : i32
    %80 = arith.index_cast %79 : i32 to index
    %c0_19 = arith.constant 0 : index
    %81 = vector.load %arg2[%80, %c0_19] : memref<800x128xf32, #tpu.memory_space<vmem>>, vector<1x128xf32>
    %82 = arith.addf %76, %81 : vector<1x128xf32>
    %83 = arith.index_cast %4 : i32 to index
    %c13 = arith.constant 13 : index
    %84 = memref.load %arg1[%83, %c13] : memref<8x16xi32, #tpu.memory_space<smem>>
    %c650_i32 = arith.constant 650 : i32
    %85 = arith.addi %c650_i32, %84 : i32
    %86 = arith.index_cast %85 : i32 to index
    %c0_20 = arith.constant 0 : index
    %87 = vector.load %arg2[%86, %c0_20] : memref<800x128xf32, #tpu.memory_space<vmem>>, vector<1x128xf32>
    %88 = arith.addf %82, %87 : vector<1x128xf32>
    %89 = arith.index_cast %4 : i32 to index
    %c14 = arith.constant 14 : index
    %90 = memref.load %arg1[%89, %c14] : memref<8x16xi32, #tpu.memory_space<smem>>
    %c700_i32 = arith.constant 700 : i32
    %91 = arith.addi %c700_i32, %90 : i32
    %92 = arith.index_cast %91 : i32 to index
    %c0_21 = arith.constant 0 : index
    %93 = vector.load %arg2[%92, %c0_21] : memref<800x128xf32, #tpu.memory_space<vmem>>, vector<1x128xf32>
    %94 = arith.addf %88, %93 : vector<1x128xf32>
    %95 = arith.index_cast %4 : i32 to index
    %c15 = arith.constant 15 : index
    %96 = memref.load %arg1[%95, %c15] : memref<8x16xi32, #tpu.memory_space<smem>>
    %c750_i32 = arith.constant 750 : i32
    %97 = arith.addi %c750_i32, %96 : i32
    %98 = arith.index_cast %97 : i32 to index
    %c0_22 = arith.constant 0 : index
    %99 = vector.load %arg2[%98, %c0_22] : memref<800x128xf32, #tpu.memory_space<vmem>>, vector<1x128xf32>
    %100 = arith.addf %94, %99 : vector<1x128xf32>
    %101 = arith.index_cast %c0_i32 : i32 to index
    %c0_23 = arith.constant 0 : index
    %102 = vector.load %arg7[%101, %c0_23] : memref<8x128xf32, #tpu.memory_space<vmem>>, vector<1x128xf32>
    tpu.vector_store %arg7[%101, %c0_23], %100 {strides = array<i32>} : memref<8x128xf32, #tpu.memory_space<vmem>>, vector<1x128xf32>,
    %c1_i32 = arith.constant 1 : i32
    %c8_i32_24 = arith.constant 8 : i32
    %103 = arith.muli %arg0, %c8_i32_24 : i32
    %104 = arith.addi %103, %c1_i32 : i32
    %105 = arith.index_cast %104 : i32 to index
    %c0_25 = arith.constant 0 : index
    %106 = memref.load %arg1[%105, %c0_25] : memref<8x16xi32, #tpu.memory_space<smem>>
    %c0_i32_26 = arith.constant 0 : i32
    %107 = arith.addi %c0_i32_26, %106 : i32
    %108 = arith.index_cast %107 : i32 to index
    %c0_27 = arith.constant 0 : index
    %109 = vector.load %arg2[%108, %c0_27] : memref<800x128xf32, #tpu.memory_space<vmem>>, vector<1x128xf32>
    %110 = arith.addf %0, %109 : vector<1x128xf32>
    %111 = arith.index_cast %104 : i32 to index
    %c1_28 = arith.constant 1 : index
    %112 = memref.load %arg1[%111, %c1_28] : memref<8x16xi32, #tpu.memory_space<smem>>
    %c50_i32_29 = arith.constant 50 : i32
    %113 = arith.addi %c50_i32_29, %112 : i32
    %114 = arith.index_cast %113 : i32 to index
    %c0_30 = arith.constant 0 : index
    %115 = vector.load %arg2[%114, %c0_30] : memref<800x128xf32, #tpu.memory_space<vmem>>, vector<1x128xf32>
    %116 = arith.addf %110, %115 : vector<1x128xf32>
    %117 = arith.index_cast %104 : i32 to index
    %c2_31 = arith.constant 2 : index
    %118 = memref.load %arg1[%117, %c2_31] : memref<8x16xi32, #tpu.memory_space<smem>>
    %c100_i32_32 = arith.constant 100 : i32
    %119 = arith.addi %c100_i32_32, %118 : i32
    %120 = arith.index_cast %119 : i32 to index
    %c0_33 = arith.constant 0 : index
    %121 = vector.load %arg2[%120, %c0_33] : memref<800x128xf32, #tpu.memory_space<vmem>>, vector<1x128xf32>
    %122 = arith.addf %116, %121 : vector<1x128xf32>
    %123 = arith.index_cast %104 : i32 to index
    %c3_34 = arith.constant 3 : index
    %124 = memref.load %arg1[%123, %c3_34] : memref<8x16xi32, #tpu.memory_space<smem>>
    %c150_i32_35 = arith.constant 150 : i32
    %125 = arith.addi %c150_i32_35, %124 : i32
    %126 = arith.index_cast %125 : i32 to index
    %c0_36 = arith.constant 0 : index
    %127 = vector.load %arg2[%126, %c0_36] : memref<800x128xf32, #tpu.memory_space<vmem>>, vector<1x128xf32>
    %128 = arith.addf %122, %127 : vector<1x128xf32>
    %129 = arith.index_cast %104 : i32 to index
    %c4_37 = arith.constant 4 : index
    %130 = memref.load %arg1[%129, %c4_37] : memref<8x16xi32, #tpu.memory_space<smem>>
    %c200_i32_38 = arith.constant 200 : i32
    %131 = arith.addi %c200_i32_38, %130 : i32
    %132 = arith.index_cast %131 : i32 to index
    %c0_39 = arith.constant 0 : index
    %133 = vector.load %arg2[%132, %c0_39] : memref<800x128xf32, #tpu.memory_space<vmem>>, vector<1x128xf32>
    %134 = arith.addf %128, %133 : vector<1x128xf32>
    %135 = arith.index_cast %104 : i32 to index
    %c5_40 = arith.constant 5 : index
    %136 = memref.load %arg1[%135, %c5_40] : memref<8x16xi32, #tpu.memory_space<smem>>
    %c250_i32_41 = arith.constant 250 : i32
    %137 = arith.addi %c250_i32_41, %136 : i32
    %138 = arith.index_cast %137 : i32 to index
    %c0_42 = arith.constant 0 : index
    %139 = vector.load %arg2[%138, %c0_42] : memref<800x128xf32, #tpu.memory_space<vmem>>, vector<1x128xf32>
    %140 = arith.addf %134, %139 : vector<1x128xf32>
    %141 = arith.index_cast %104 : i32 to index
    %c6_43 = arith.constant 6 : index
    %142 = memref.load %arg1[%141, %c6_43] : memref<8x16xi32, #tpu.memory_space<smem>>
    %c300_i32_44 = arith.constant 300 : i32
    %143 = arith.addi %c300_i32_44, %142 : i32
    %144 = arith.index_cast %143 : i32 to index
    %c0_45 = arith.constant 0 : index
    %145 = vector.load %arg2[%144, %c0_45] : memref<800x128xf32, #tpu.memory_space<vmem>>, vector<1x128xf32>
    %146 = arith.addf %140, %145 : vector<1x128xf32>
    %147 = arith.index_cast %104 : i32 to index
    %c7_46 = arith.constant 7 : index
    %148 = memref.load %arg1[%147, %c7_46] : memref<8x16xi32, #tpu.memory_space<smem>>
    %c350_i32_47 = arith.constant 350 : i32
    %149 = arith.addi %c350_i32_47, %148 : i32
    %150 = arith.index_cast %149 : i32 to index
    %c0_48 = arith.constant 0 : index
    %151 = vector.load %arg2[%150, %c0_48] : memref<800x128xf32, #tpu.memory_space<vmem>>, vector<1x128xf32>
    %152 = arith.addf %146, %151 : vector<1x128xf32>
    %153 = arith.index_cast %104 : i32 to index
    %c8_49 = arith.constant 8 : index
    %154 = memref.load %arg1[%153, %c8_49] : memref<8x16xi32, #tpu.memory_space<smem>>
    %c400_i32_50 = arith.constant 400 : i32
    %155 = arith.addi %c400_i32_50, %154 : i32
    %156 = arith.index_cast %155 : i32 to index
    %c0_51 = arith.constant 0 : index
    %157 = vector.load %arg2[%156, %c0_51] : memref<800x128xf32, #tpu.memory_space<vmem>>, vector<1x128xf32>
    %158 = arith.addf %152, %157 : vector<1x128xf32>
    %159 = arith.index_cast %104 : i32 to index
    %c9_52 = arith.constant 9 : index
    %160 = memref.load %arg1[%159, %c9_52] : memref<8x16xi32, #tpu.memory_space<smem>>
    %c450_i32_53 = arith.constant 450 : i32
    %161 = arith.addi %c450_i32_53, %160 : i32
    %162 = arith.index_cast %161 : i32 to index
    %c0_54 = arith.constant 0 : index
    %163 = vector.load %arg2[%162, %c0_54] : memref<800x128xf32, #tpu.memory_space<vmem>>, vector<1x128xf32>
    %164 = arith.addf %158, %163 : vector<1x128xf32>
    %165 = arith.index_cast %104 : i32 to index
    %c10_55 = arith.constant 10 : index
    %166 = memref.load %arg1[%165, %c10_55] : memref<8x16xi32, #tpu.memory_space<smem>>
    %c500_i32_56 = arith.constant 500 : i32
    %167 = arith.addi %c500_i32_56, %166 : i32
    %168 = arith.index_cast %167 : i32 to index
    %c0_57 = arith.constant 0 : index
    %169 = vector.load %arg2[%168, %c0_57] : memref<800x128xf32, #tpu.memory_space<vmem>>, vector<1x128xf32>
    %170 = arith.addf %164, %169 : vector<1x128xf32>
    %171 = arith.index_cast %104 : i32 to index
    %c11_58 = arith.constant 11 : index
    %172 = memref.load %arg1[%171, %c11_58] : memref<8x16xi32, #tpu.memory_space<smem>>
    %c550_i32_59 = arith.constant 550 : i32
    %173 = arith.addi %c550_i32_59, %172 : i32
    %174 = arith.index_cast %173 : i32 to index
    %c0_60 = arith.constant 0 : index
    %175 = vector.load %arg2[%174, %c0_60] : memref<800x128xf32, #tpu.memory_space<vmem>>, vector<1x128xf32>
    %176 = arith.addf %170, %175 : vector<1x128xf32>
    %177 = arith.index_cast %104 : i32 to index
    %c12_61 = arith.constant 12 : index
    %178 = memref.load %arg1[%177, %c12_61] : memref<8x16xi32, #tpu.memory_space<smem>>
    %c600_i32_62 = arith.constant 600 : i32
    %179 = arith.addi %c600_i32_62, %178 : i32
    %180 = arith.index_cast %179 : i32 to index
    %c0_63 = arith.constant 0 : index
    %181 = vector.load %arg2[%180, %c0_63] : memref<800x128xf32, #tpu.memory_space<vmem>>, vector<1x128xf32>
    %182 = arith.addf %176, %181 : vector<1x128xf32>
    %183 = arith.index_cast %104 : i32 to index
    %c13_64 = arith.constant 13 : index
    %184 = memref.load %arg1[%183, %c13_64] : memref<8x16xi32, #tpu.memory_space<smem>>
    %c650_i32_65 = arith.constant 650 : i32
    %185 = arith.addi %c650_i32_65, %184 : i32
    %186 = arith.index_cast %185 : i32 to index
    %c0_66 = arith.constant 0 : index
    %187 = vector.load %arg2[%186, %c0_66] : memref<800x128xf32, #tpu.memory_space<vmem>>, vector<1x128xf32>
    %188 = arith.addf %182, %187 : vector<1x128xf32>
    %189 = arith.index_cast %104 : i32 to index
    %c14_67 = arith.constant 14 : index
    %190 = memref.load %arg1[%189, %c14_67] : memref<8x16xi32, #tpu.memory_space<smem>>
    %c700_i32_68 = arith.constant 700 : i32
    %191 = arith.addi %c700_i32_68, %190 : i32
    %192 = arith.index_cast %191 : i32 to index
    %c0_69 = arith.constant 0 : index
    %193 = vector.load %arg2[%192, %c0_69] : memref<800x128xf32, #tpu.memory_space<vmem>>, vector<1x128xf32>
    %194 = arith.addf %188, %193 : vector<1x128xf32>
    %195 = arith.index_cast %104 : i32 to index
    %c15_70 = arith.constant 15 : index
    %196 = memref.load %arg1[%195, %c15_70] : memref<8x16xi32, #tpu.memory_space<smem>>
    %c750_i32_71 = arith.constant 750 : i32
    %197 = arith.addi %c750_i32_71, %196 : i32
    %198 = arith.index_cast %197 : i32 to index
    %c0_72 = arith.constant 0 : index
    %199 = vector.load %arg2[%198, %c0_72] : memref<800x128xf32, #tpu.memory_space<vmem>>, vector<1x128xf32>
    %200 = arith.addf %194, %199 : vector<1x128xf32>
    %201 = arith.index_cast %c1_i32 : i32 to index
    %c0_73 = arith.constant 0 : index
    %202 = vector.load %arg7[%201, %c0_73] : memref<8x128xf32, #tpu.memory_space<vmem>>, vector<1x128xf32>
    tpu.vector_store %arg7[%201, %c0_73], %200 {strides = array<i32>} : memref<8x128xf32, #tpu.memory_space<vmem>>, vector<1x128xf32>,
    %c2_i32 = arith.constant 2 : i32
    %c8_i32_74 = arith.constant 8 : i32
    %203 = arith.muli %arg0, %c8_i32_74 : i32
    %204 = arith.addi %203, %c2_i32 : i32
    %205 = arith.index_cast %204 : i32 to index
    %c0_75 = arith.constant 0 : index
    %206 = memref.load %arg1[%205, %c0_75] : memref<8x16xi32, #tpu.memory_space<smem>>
    %c0_i32_76 = arith.constant 0 : i32
    %207 = arith.addi %c0_i32_76, %206 : i32
    %208 = arith.index_cast %207 : i32 to index
    %c0_77 = arith.constant 0 : index
    %209 = vector.load %arg2[%208, %c0_77] : memref<800x128xf32, #tpu.memory_space<vmem>>, vector<1x128xf32>
    %210 = arith.addf %0, %209 : vector<1x128xf32>
    %211 = arith.index_cast %204 : i32 to index
    %c1_78 = arith.constant 1 : index
    %212 = memref.load %arg1[%211, %c1_78] : memref<8x16xi32, #tpu.memory_space<smem>>
    %c50_i32_79 = arith.constant 50 : i32
    %213 = arith.addi %c50_i32_79, %212 : i32
    %214 = arith.index_cast %213 : i32 to index
    %c0_80 = arith.constant 0 : index
    %215 = vector.load %arg2[%214, %c0_80] : memref<800x128xf32, #tpu.memory_space<vmem>>, vector<1x128xf32>
    %216 = arith.addf %210, %215 : vector<1x128xf32>
    %217 = arith.index_cast %204 : i32 to index
    %c2_81 = arith.constant 2 : index
    %218 = memref.load %arg1[%217, %c2_81] : memref<8x16xi32, #tpu.memory_space<smem>>
    %c100_i32_82 = arith.constant 100 : i32
    %219 = arith.addi %c100_i32_82, %218 : i32
    %220 = arith.index_cast %219 : i32 to index
    %c0_83 = arith.constant 0 : index
    %221 = vector.load %arg2[%220, %c0_83] : memref<800x128xf32, #tpu.memory_space<vmem>>, vector<1x128xf32>
    %222 = arith.addf %216, %221 : vector<1x128xf32>
    %223 = arith.index_cast %204 : i32 to index
    %c3_84 = arith.constant 3 : index
    %224 = memref.load %arg1[%223, %c3_84] : memref<8x16xi32, #tpu.memory_space<smem>>
    %c150_i32_85 = arith.constant 150 : i32
    %225 = arith.addi %c150_i32_85, %224 : i32
    %226 = arith.index_cast %225 : i32 to index
    %c0_86 = arith.constant 0 : index
    %227 = vector.load %arg2[%226, %c0_86] : memref<800x128xf32, #tpu.memory_space<vmem>>, vector<1x128xf32>
    %228 = arith.addf %222, %227 : vector<1x128xf32>
    %229 = arith.index_cast %204 : i32 to index
    %c4_87 = arith.constant 4 : index
    %230 = memref.load %arg1[%229, %c4_87] : memref<8x16xi32, #tpu.memory_space<smem>>
    %c200_i32_88 = arith.constant 200 : i32
    %231 = arith.addi %c200_i32_88, %230 : i32
    %232 = arith.index_cast %231 : i32 to index
    %c0_89 = arith.constant 0 : index
    %233 = vector.load %arg2[%232, %c0_89] : memref<800x128xf32, #tpu.memory_space<vmem>>, vector<1x128xf32>
    %234 = arith.addf %228, %233 : vector<1x128xf32>
    %235 = arith.index_cast %204 : i32 to index
    %c5_90 = arith.constant 5 : index
    %236 = memref.load %arg1[%235, %c5_90] : memref<8x16xi32, #tpu.memory_space<smem>>
    %c250_i32_91 = arith.constant 250 : i32
    %237 = arith.addi %c250_i32_91, %236 : i32
    %238 = arith.index_cast %237 : i32 to index
    %c0_92 = arith.constant 0 : index
    %239 = vector.load %arg2[%238, %c0_92] : memref<800x128xf32, #tpu.memory_space<vmem>>, vector<1x128xf32>
    %240 = arith.addf %234, %239 : vector<1x128xf32>
    %241 = arith.index_cast %204 : i32 to index
    %c6_93 = arith.constant 6 : index
    %242 = memref.load %arg1[%241, %c6_93] : memref<8x16xi32, #tpu.memory_space<smem>>
    %c300_i32_94 = arith.constant 300 : i32
    %243 = arith.addi %c300_i32_94, %242 : i32
    %244 = arith.index_cast %243 : i32 to index
    %c0_95 = arith.constant 0 : index
    %245 = vector.load %arg2[%244, %c0_95] : memref<800x128xf32, #tpu.memory_space<vmem>>, vector<1x128xf32>
    %246 = arith.addf %240, %245 : vector<1x128xf32>
    %247 = arith.index_cast %204 : i32 to index
    %c7_96 = arith.constant 7 : index
    %248 = memref.load %arg1[%247, %c7_96] : memref<8x16xi32, #tpu.memory_space<smem>>
    %c350_i32_97 = arith.constant 350 : i32
    %249 = arith.addi %c350_i32_97, %248 : i32
    %250 = arith.index_cast %249 : i32 to index
    %c0_98 = arith.constant 0 : index
    %251 = vector.load %arg2[%250, %c0_98] : memref<800x128xf32, #tpu.memory_space<vmem>>, vector<1x128xf32>
    %252 = arith.addf %246, %251 : vector<1x128xf32>
    %253 = arith.index_cast %204 : i32 to index
    %c8_99 = arith.constant 8 : index
    %254 = memref.load %arg1[%253, %c8_99] : memref<8x16xi32, #tpu.memory_space<smem>>
    %c400_i32_100 = arith.constant 400 : i32
    %255 = arith.addi %c400_i32_100, %254 : i32
    %256 = arith.index_cast %255 : i32 to index
    %c0_101 = arith.constant 0 : index
    %257 = vector.load %arg2[%256, %c0_101] : memref<800x128xf32, #tpu.memory_space<vmem>>, vector<1x128xf32>
    %258 = arith.addf %252, %257 : vector<1x128xf32>
    %259 = arith.index_cast %204 : i32 to index
    %c9_102 = arith.constant 9 : index
    %260 = memref.load %arg1[%259, %c9_102] : memref<8x16xi32, #tpu.memory_space<smem>>
    %c450_i32_103 = arith.constant 450 : i32
    %261 = arith.addi %c450_i32_103, %260 : i32
    %262 = arith.index_cast %261 : i32 to index
    %c0_104 = arith.constant 0 : index
    %263 = vector.load %arg2[%262, %c0_104] : memref<800x128xf32, #tpu.memory_space<vmem>>, vector<1x128xf32>
    %264 = arith.addf %258, %263 : vector<1x128xf32>
    %265 = arith.index_cast %204 : i32 to index
    %c10_105 = arith.constant 10 : index
    %266 = memref.load %arg1[%265, %c10_105] : memref<8x16xi32, #tpu.memory_space<smem>>
    %c500_i32_106 = arith.constant 500 : i32
    %267 = arith.addi %c500_i32_106, %266 : i32
    %268 = arith.index_cast %267 : i32 to index
    %c0_107 = arith.constant 0 : index
    %269 = vector.load %arg2[%268, %c0_107] : memref<800x128xf32, #tpu.memory_space<vmem>>, vector<1x128xf32>
    %270 = arith.addf %264, %269 : vector<1x128xf32>
    %271 = arith.index_cast %204 : i32 to index
    %c11_108 = arith.constant 11 : index
    %272 = memref.load %arg1[%271, %c11_108] : memref<8x16xi32, #tpu.memory_space<smem>>
    %c550_i32_109 = arith.constant 550 : i32
    %273 = arith.addi %c550_i32_109, %272 : i32
    %274 = arith.index_cast %273 : i32 to index
    %c0_110 = arith.constant 0 : index
    %275 = vector.load %arg2[%274, %c0_110] : memref<800x128xf32, #tpu.memory_space<vmem>>, vector<1x128xf32>
    %276 = arith.addf %270, %275 : vector<1x128xf32>
    %277 = arith.index_cast %204 : i32 to index
    %c12_111 = arith.constant 12 : index
    %278 = memref.load %arg1[%277, %c12_111] : memref<8x16xi32, #tpu.memory_space<smem>>
    %c600_i32_112 = arith.constant 600 : i32
    %279 = arith.addi %c600_i32_112, %278 : i32
    %280 = arith.index_cast %279 : i32 to index
    %c0_113 = arith.constant 0 : index
    %281 = vector.load %arg2[%280, %c0_113] : memref<800x128xf32, #tpu.memory_space<vmem>>, vector<1x128xf32>
    %282 = arith.addf %276, %281 : vector<1x128xf32>
    %283 = arith.index_cast %204 : i32 to index
    %c13_114 = arith.constant 13 : index
    %284 = memref.load %arg1[%283, %c13_114] : memref<8x16xi32, #tpu.memory_space<smem>>
    %c650_i32_115 = arith.constant 650 : i32
    %285 = arith.addi %c650_i32_115, %284 : i32
    %286 = arith.index_cast %285 : i32 to index
    %c0_116 = arith.constant 0 : index
    %287 = vector.load %arg2[%286, %c0_116] : memref<800x128xf32, #tpu.memory_space<vmem>>, vector<1x128xf32>
    %288 = arith.addf %282, %287 : vector<1x128xf32>
    %289 = arith.index_cast %204 : i32 to index
    %c14_117 = arith.constant 14 : index
    %290 = memref.load %arg1[%289, %c14_117] : memref<8x16xi32, #tpu.memory_space<smem>>
    %c700_i32_118 = arith.constant 700 : i32
    %291 = arith.addi %c700_i32_118, %290 : i32
    %292 = arith.index_cast %291 : i32 to index
    %c0_119 = arith.constant 0 : index
    %293 = vector.load %arg2[%292, %c0_119] : memref<800x128xf32, #tpu.memory_space<vmem>>, vector<1x128xf32>
    %294 = arith.addf %288, %293 : vector<1x128xf32>
    %295 = arith.index_cast %204 : i32 to index
    %c15_120 = arith.constant 15 : index
    %296 = memref.load %arg1[%295, %c15_120] : memref<8x16xi32, #tpu.memory_space<smem>>
    %c750_i32_121 = arith.constant 750 : i32
    %297 = arith.addi %c750_i32_121, %296 : i32
    %298 = arith.index_cast %297 : i32 to index
    %c0_122 = arith.constant 0 : index
    %299 = vector.load %arg2[%298, %c0_122] : memref<800x128xf32, #tpu.memory_space<vmem>>, vector<1x128xf32>
    %300 = arith.addf %294, %299 : vector<1x128xf32>
    %301 = arith.index_cast %c2_i32 : i32 to index
    %c0_123 = arith.constant 0 : index
    %302 = vector.load %arg7[%301, %c0_123] : memref<8x128xf32, #tpu.memory_space<vmem>>, vector<1x128xf32>
    tpu.vector_store %arg7[%301, %c0_123], %300 {strides = array<i32>} : memref<8x128xf32, #tpu.memory_space<vmem>>, vector<1x128xf32>,
    %c3_i32 = arith.constant 3 : i32
    %c8_i32_124 = arith.constant 8 : i32
    %303 = arith.muli %arg0, %c8_i32_124 : i32
    %304 = arith.addi %303, %c3_i32 : i32
    %305 = arith.index_cast %304 : i32 to index
    %c0_125 = arith.constant 0 : index
    %306 = memref.load %arg1[%305, %c0_125] : memref<8x16xi32, #tpu.memory_space<smem>>
    %c0_i32_126 = arith.constant 0 : i32
    %307 = arith.addi %c0_i32_126, %306 : i32
    %308 = arith.index_cast %307 : i32 to index
    %c0_127 = arith.constant 0 : index
    %309 = vector.load %arg2[%308, %c0_127] : memref<800x128xf32, #tpu.memory_space<vmem>>, vector<1x128xf32>
    %310 = arith.addf %0, %309 : vector<1x128xf32>
    %311 = arith.index_cast %304 : i32 to index
    %c1_128 = arith.constant 1 : index
    %312 = memref.load %arg1[%311, %c1_128] : memref<8x16xi32, #tpu.memory_space<smem>>
    %c50_i32_129 = arith.constant 50 : i32
    %313 = arith.addi %c50_i32_129, %312 : i32
    %314 = arith.index_cast %313 : i32 to index
    %c0_130 = arith.constant 0 : index
    %315 = vector.load %arg2[%314, %c0_130] : memref<800x128xf32, #tpu.memory_space<vmem>>, vector<1x128xf32>
    %316 = arith.addf %310, %315 : vector<1x128xf32>
    %317 = arith.index_cast %304 : i32 to index
    %c2_131 = arith.constant 2 : index
    %318 = memref.load %arg1[%317, %c2_131] : memref<8x16xi32, #tpu.memory_space<smem>>
    %c100_i32_132 = arith.constant 100 : i32
    %319 = arith.addi %c100_i32_132, %318 : i32
    %320 = arith.index_cast %319 : i32 to index
    %c0_133 = arith.constant 0 : index
    %321 = vector.load %arg2[%320, %c0_133] : memref<800x128xf32, #tpu.memory_space<vmem>>, vector<1x128xf32>
    %322 = arith.addf %316, %321 : vector<1x128xf32>
    %323 = arith.index_cast %304 : i32 to index
    %c3_134 = arith.constant 3 : index
    %324 = memref.load %arg1[%323, %c3_134] : memref<8x16xi32, #tpu.memory_space<smem>>
    %c150_i32_135 = arith.constant 150 : i32
    %325 = arith.addi %c150_i32_135, %324 : i32
    %326 = arith.index_cast %325 : i32 to index
    %c0_136 = arith.constant 0 : index
    %327 = vector.load %arg2[%326, %c0_136] : memref<800x128xf32, #tpu.memory_space<vmem>>, vector<1x128xf32>
    %328 = arith.addf %322, %327 : vector<1x128xf32>
    %329 = arith.index_cast %304 : i32 to index
    %c4_137 = arith.constant 4 : index
    %330 = memref.load %arg1[%329, %c4_137] : memref<8x16xi32, #tpu.memory_space<smem>>
    %c200_i32_138 = arith.constant 200 : i32
    %331 = arith.addi %c200_i32_138, %330 : i32
    %332 = arith.index_cast %331 : i32 to index
    %c0_139 = arith.constant 0 : index
    %333 = vector.load %arg2[%332, %c0_139] : memref<800x128xf32, #tpu.memory_space<vmem>>, vector<1x128xf32>
    %334 = arith.addf %328, %333 : vector<1x128xf32>
    %335 = arith.index_cast %304 : i32 to index
    %c5_140 = arith.constant 5 : index
    %336 = memref.load %arg1[%335, %c5_140] : memref<8x16xi32, #tpu.memory_space<smem>>
    %c250_i32_141 = arith.constant 250 : i32
    %337 = arith.addi %c250_i32_141, %336 : i32
    %338 = arith.index_cast %337 : i32 to index
    %c0_142 = arith.constant 0 : index
    %339 = vector.load %arg2[%338, %c0_142] : memref<800x128xf32, #tpu.memory_space<vmem>>, vector<1x128xf32>
    %340 = arith.addf %334, %339 : vector<1x128xf32>
    %341 = arith.index_cast %304 : i32 to index
    %c6_143 = arith.constant 6 : index
    %342 = memref.load %arg1[%341, %c6_143] : memref<8x16xi32, #tpu.memory_space<smem>>
    %c300_i32_144 = arith.constant 300 : i32
    %343 = arith.addi %c300_i32_144, %342 : i32
    %344 = arith.index_cast %343 : i32 to index
    %c0_145 = arith.constant 0 : index
    %345 = vector.load %arg2[%344, %c0_145] : memref<800x128xf32, #tpu.memory_space<vmem>>, vector<1x128xf32>
    %346 = arith.addf %340, %345 : vector<1x128xf32>
    %347 = arith.index_cast %304 : i32 to index
    %c7_146 = arith.constant 7 : index
    %348 = memref.load %arg1[%347, %c7_146] : memref<8x16xi32, #tpu.memory_space<smem>>
    %c350_i32_147 = arith.constant 350 : i32
    %349 = arith.addi %c350_i32_147, %348 : i32
    %350 = arith.index_cast %349 : i32 to index
    %c0_148 = arith.constant 0 : index
    %351 = vector.load %arg2[%350, %c0_148] : memref<800x128xf32, #tpu.memory_space<vmem>>, vector<1x128xf32>
    %352 = arith.addf %346, %351 : vector<1x128xf32>
    %353 = arith.index_cast %304 : i32 to index
    %c8_149 = arith.constant 8 : index
    %354 = memref.load %arg1[%353, %c8_149] : memref<8x16xi32, #tpu.memory_space<smem>>
    %c400_i32_150 = arith.constant 400 : i32
    %355 = arith.addi %c400_i32_150, %354 : i32
    %356 = arith.index_cast %355 : i32 to index
    %c0_151 = arith.constant 0 : index
    %357 = vector.load %arg2[%356, %c0_151] : memref<800x128xf32, #tpu.memory_space<vmem>>, vector<1x128xf32>
    %358 = arith.addf %352, %357 : vector<1x128xf32>
    %359 = arith.index_cast %304 : i32 to index
    %c9_152 = arith.constant 9 : index
    %360 = memref.load %arg1[%359, %c9_152] : memref<8x16xi32, #tpu.memory_space<smem>>
    %c450_i32_153 = arith.constant 450 : i32
    %361 = arith.addi %c450_i32_153, %360 : i32
    %362 = arith.index_cast %361 : i32 to index
    %c0_154 = arith.constant 0 : index
    %363 = vector.load %arg2[%362, %c0_154] : memref<800x128xf32, #tpu.memory_space<vmem>>, vector<1x128xf32>
    %364 = arith.addf %358, %363 : vector<1x128xf32>
    %365 = arith.index_cast %304 : i32 to index
    %c10_155 = arith.constant 10 : index
    %366 = memref.load %arg1[%365, %c10_155] : memref<8x16xi32, #tpu.memory_space<smem>>
    %c500_i32_156 = arith.constant 500 : i32
    %367 = arith.addi %c500_i32_156, %366 : i32
    %368 = arith.index_cast %367 : i32 to index
    %c0_157 = arith.constant 0 : index
    %369 = vector.load %arg2[%368, %c0_157] : memref<800x128xf32, #tpu.memory_space<vmem>>, vector<1x128xf32>
    %370 = arith.addf %364, %369 : vector<1x128xf32>
    %371 = arith.index_cast %304 : i32 to index
    %c11_158 = arith.constant 11 : index
    %372 = memref.load %arg1[%371, %c11_158] : memref<8x16xi32, #tpu.memory_space<smem>>
    %c550_i32_159 = arith.constant 550 : i32
    %373 = arith.addi %c550_i32_159, %372 : i32
    %374 = arith.index_cast %373 : i32 to index
    %c0_160 = arith.constant 0 : index
    %375 = vector.load %arg2[%374, %c0_160] : memref<800x128xf32, #tpu.memory_space<vmem>>, vector<1x128xf32>
    %376 = arith.addf %370, %375 : vector<1x128xf32>
    %377 = arith.index_cast %304 : i32 to index
    %c12_161 = arith.constant 12 : index
    %378 = memref.load %arg1[%377, %c12_161] : memref<8x16xi32, #tpu.memory_space<smem>>
    %c600_i32_162 = arith.constant 600 : i32
    %379 = arith.addi %c600_i32_162, %378 : i32
    %380 = arith.index_cast %379 : i32 to index
    %c0_163 = arith.constant 0 : index
    %381 = vector.load %arg2[%380, %c0_163] : memref<800x128xf32, #tpu.memory_space<vmem>>, vector<1x128xf32>
    %382 = arith.addf %376, %381 : vector<1x128xf32>
    %383 = arith.index_cast %304 : i32 to index
    %c13_164 = arith.constant 13 : index
    %384 = memref.load %arg1[%383, %c13_164] : memref<8x16xi32, #tpu.memory_space<smem>>
    %c650_i32_165 = arith.constant 650 : i32
    %385 = arith.addi %c650_i32_165, %384 : i32
    %386 = arith.index_cast %385 : i32 to index
    %c0_166 = arith.constant 0 : index
    %387 = vector.load %arg2[%386, %c0_166] : memref<800x128xf32, #tpu.memory_space<vmem>>, vector<1x128xf32>
    %388 = arith.addf %382, %387 : vector<1x128xf32>
    %389 = arith.index_cast %304 : i32 to index
    %c14_167 = arith.constant 14 : index
    %390 = memref.load %arg1[%389, %c14_167] : memref<8x16xi32, #tpu.memory_space<smem>>
    %c700_i32_168 = arith.constant 700 : i32
    %391 = arith.addi %c700_i32_168, %390 : i32
    %392 = arith.index_cast %391 : i32 to index
    %c0_169 = arith.constant 0 : index
    %393 = vector.load %arg2[%392, %c0_169] : memref<800x128xf32, #tpu.memory_space<vmem>>, vector<1x128xf32>
    %394 = arith.addf %388, %393 : vector<1x128xf32>
    %395 = arith.index_cast %304 : i32 to index
    %c15_170 = arith.constant 15 : index
    %396 = memref.load %arg1[%395, %c15_170] : memref<8x16xi32, #tpu.memory_space<smem>>
    %c750_i32_171 = arith.constant 750 : i32
    %397 = arith.addi %c750_i32_171, %396 : i32
    %398 = arith.index_cast %397 : i32 to index
    %c0_172 = arith.constant 0 : index
    %399 = vector.load %arg2[%398, %c0_172] : memref<800x128xf32, #tpu.memory_space<vmem>>, vector<1x128xf32>
    %400 = arith.addf %394, %399 : vector<1x128xf32>
    %401 = arith.index_cast %c3_i32 : i32 to index
    %c0_173 = arith.constant 0 : index
    %402 = vector.load %arg7[%401, %c0_173] : memref<8x128xf32, #tpu.memory_space<vmem>>, vector<1x128xf32>
    tpu.vector_store %arg7[%401, %c0_173], %400 {strides = array<i32>} : memref<8x128xf32, #tpu.memory_space<vmem>>, vector<1x128xf32>,
    %c4_i32 = arith.constant 4 : i32
    %c8_i32_174 = arith.constant 8 : i32
    %403 = arith.muli %arg0, %c8_i32_174 : i32
    %404 = arith.addi %403, %c4_i32 : i32
    %405 = arith.index_cast %404 : i32 to index
    %c0_175 = arith.constant 0 : index
    %406 = memref.load %arg1[%405, %c0_175] : memref<8x16xi32, #tpu.memory_space<smem>>
    %c0_i32_176 = arith.constant 0 : i32
    %407 = arith.addi %c0_i32_176, %406 : i32
    %408 = arith.index_cast %407 : i32 to index
    %c0_177 = arith.constant 0 : index
    %409 = vector.load %arg2[%408, %c0_177] : memref<800x128xf32, #tpu.memory_space<vmem>>, vector<1x128xf32>
    %410 = arith.addf %0, %409 : vector<1x128xf32>
    %411 = arith.index_cast %404 : i32 to index
    %c1_178 = arith.constant 1 : index
    %412 = memref.load %arg1[%411, %c1_178] : memref<8x16xi32, #tpu.memory_space<smem>>
    %c50_i32_179 = arith.constant 50 : i32
    %413 = arith.addi %c50_i32_179, %412 : i32
    %414 = arith.index_cast %413 : i32 to index
    %c0_180 = arith.constant 0 : index
    %415 = vector.load %arg2[%414, %c0_180] : memref<800x128xf32, #tpu.memory_space<vmem>>, vector<1x128xf32>
    %416 = arith.addf %410, %415 : vector<1x128xf32>
    %417 = arith.index_cast %404 : i32 to index
    %c2_181 = arith.constant 2 : index
    %418 = memref.load %arg1[%417, %c2_181] : memref<8x16xi32, #tpu.memory_space<smem>>
    %c100_i32_182 = arith.constant 100 : i32
    %419 = arith.addi %c100_i32_182, %418 : i32
    %420 = arith.index_cast %419 : i32 to index
    %c0_183 = arith.constant 0 : index
    %421 = vector.load %arg2[%420, %c0_183] : memref<800x128xf32, #tpu.memory_space<vmem>>, vector<1x128xf32>
    %422 = arith.addf %416, %421 : vector<1x128xf32>
    %423 = arith.index_cast %404 : i32 to index
    %c3_184 = arith.constant 3 : index
    %424 = memref.load %arg1[%423, %c3_184] : memref<8x16xi32, #tpu.memory_space<smem>>
    %c150_i32_185 = arith.constant 150 : i32
    %425 = arith.addi %c150_i32_185, %424 : i32
    %426 = arith.index_cast %425 : i32 to index
    %c0_186 = arith.constant 0 : index
    %427 = vector.load %arg2[%426, %c0_186] : memref<800x128xf32, #tpu.memory_space<vmem>>, vector<1x128xf32>
    %428 = arith.addf %422, %427 : vector<1x128xf32>
    %429 = arith.index_cast %404 : i32 to index
    %c4_187 = arith.constant 4 : index
    %430 = memref.load %arg1[%429, %c4_187] : memref<8x16xi32, #tpu.memory_space<smem>>
    %c200_i32_188 = arith.constant 200 : i32
    %431 = arith.addi %c200_i32_188, %430 : i32
    %432 = arith.index_cast %431 : i32 to index
    %c0_189 = arith.constant 0 : index
    %433 = vector.load %arg2[%432, %c0_189] : memref<800x128xf32, #tpu.memory_space<vmem>>, vector<1x128xf32>
    %434 = arith.addf %428, %433 : vector<1x128xf32>
    %435 = arith.index_cast %404 : i32 to index
    %c5_190 = arith.constant 5 : index
    %436 = memref.load %arg1[%435, %c5_190] : memref<8x16xi32, #tpu.memory_space<smem>>
    %c250_i32_191 = arith.constant 250 : i32
    %437 = arith.addi %c250_i32_191, %436 : i32
    %438 = arith.index_cast %437 : i32 to index
    %c0_192 = arith.constant 0 : index
    %439 = vector.load %arg2[%438, %c0_192] : memref<800x128xf32, #tpu.memory_space<vmem>>, vector<1x128xf32>
    %440 = arith.addf %434, %439 : vector<1x128xf32>
    %441 = arith.index_cast %404 : i32 to index
    %c6_193 = arith.constant 6 : index
    %442 = memref.load %arg1[%441, %c6_193] : memref<8x16xi32, #tpu.memory_space<smem>>
    %c300_i32_194 = arith.constant 300 : i32
    %443 = arith.addi %c300_i32_194, %442 : i32
    %444 = arith.index_cast %443 : i32 to index
    %c0_195 = arith.constant 0 : index
    %445 = vector.load %arg2[%444, %c0_195] : memref<800x128xf32, #tpu.memory_space<vmem>>, vector<1x128xf32>
    %446 = arith.addf %440, %445 : vector<1x128xf32>
    %447 = arith.index_cast %404 : i32 to index
    %c7_196 = arith.constant 7 : index
    %448 = memref.load %arg1[%447, %c7_196] : memref<8x16xi32, #tpu.memory_space<smem>>
    %c350_i32_197 = arith.constant 350 : i32
    %449 = arith.addi %c350_i32_197, %448 : i32
    %450 = arith.index_cast %449 : i32 to index
    %c0_198 = arith.constant 0 : index
    %451 = vector.load %arg2[%450, %c0_198] : memref<800x128xf32, #tpu.memory_space<vmem>>, vector<1x128xf32>
    %452 = arith.addf %446, %451 : vector<1x128xf32>
    %453 = arith.index_cast %404 : i32 to index
    %c8_199 = arith.constant 8 : index
    %454 = memref.load %arg1[%453, %c8_199] : memref<8x16xi32, #tpu.memory_space<smem>>
    %c400_i32_200 = arith.constant 400 : i32
    %455 = arith.addi %c400_i32_200, %454 : i32
    %456 = arith.index_cast %455 : i32 to index
    %c0_201 = arith.constant 0 : index
    %457 = vector.load %arg2[%456, %c0_201] : memref<800x128xf32, #tpu.memory_space<vmem>>, vector<1x128xf32>
    %458 = arith.addf %452, %457 : vector<1x128xf32>
    %459 = arith.index_cast %404 : i32 to index
    %c9_202 = arith.constant 9 : index
    %460 = memref.load %arg1[%459, %c9_202] : memref<8x16xi32, #tpu.memory_space<smem>>
    %c450_i32_203 = arith.constant 450 : i32
    %461 = arith.addi %c450_i32_203, %460 : i32
    %462 = arith.index_cast %461 : i32 to index
    %c0_204 = arith.constant 0 : index
    %463 = vector.load %arg2[%462, %c0_204] : memref<800x128xf32, #tpu.memory_space<vmem>>, vector<1x128xf32>
    %464 = arith.addf %458, %463 : vector<1x128xf32>
    %465 = arith.index_cast %404 : i32 to index
    %c10_205 = arith.constant 10 : index
    %466 = memref.load %arg1[%465, %c10_205] : memref<8x16xi32, #tpu.memory_space<smem>>
    %c500_i32_206 = arith.constant 500 : i32
    %467 = arith.addi %c500_i32_206, %466 : i32
    %468 = arith.index_cast %467 : i32 to index
    %c0_207 = arith.constant 0 : index
    %469 = vector.load %arg2[%468, %c0_207] : memref<800x128xf32, #tpu.memory_space<vmem>>, vector<1x128xf32>
    %470 = arith.addf %464, %469 : vector<1x128xf32>
    %471 = arith.index_cast %404 : i32 to index
    %c11_208 = arith.constant 11 : index
    %472 = memref.load %arg1[%471, %c11_208] : memref<8x16xi32, #tpu.memory_space<smem>>
    %c550_i32_209 = arith.constant 550 : i32
    %473 = arith.addi %c550_i32_209, %472 : i32
    %474 = arith.index_cast %473 : i32 to index
    %c0_210 = arith.constant 0 : index
    %475 = vector.load %arg2[%474, %c0_210] : memref<800x128xf32, #tpu.memory_space<vmem>>, vector<1x128xf32>
    %476 = arith.addf %470, %475 : vector<1x128xf32>
    %477 = arith.index_cast %404 : i32 to index
    %c12_211 = arith.constant 12 : index
    %478 = memref.load %arg1[%477, %c12_211] : memref<8x16xi32, #tpu.memory_space<smem>>
    %c600_i32_212 = arith.constant 600 : i32
    %479 = arith.addi %c600_i32_212, %478 : i32
    %480 = arith.index_cast %479 : i32 to index
    %c0_213 = arith.constant 0 : index
    %481 = vector.load %arg2[%480, %c0_213] : memref<800x128xf32, #tpu.memory_space<vmem>>, vector<1x128xf32>
    %482 = arith.addf %476, %481 : vector<1x128xf32>
    %483 = arith.index_cast %404 : i32 to index
    %c13_214 = arith.constant 13 : index
    %484 = memref.load %arg1[%483, %c13_214] : memref<8x16xi32, #tpu.memory_space<smem>>
    %c650_i32_215 = arith.constant 650 : i32
    %485 = arith.addi %c650_i32_215, %484 : i32
    %486 = arith.index_cast %485 : i32 to index
    %c0_216 = arith.constant 0 : index
    %487 = vector.load %arg2[%486, %c0_216] : memref<800x128xf32, #tpu.memory_space<vmem>>, vector<1x128xf32>
    %488 = arith.addf %482, %487 : vector<1x128xf32>
    %489 = arith.index_cast %404 : i32 to index
    %c14_217 = arith.constant 14 : index
    %490 = memref.load %arg1[%489, %c14_217] : memref<8x16xi32, #tpu.memory_space<smem>>
    %c700_i32_218 = arith.constant 700 : i32
    %491 = arith.addi %c700_i32_218, %490 : i32
    %492 = arith.index_cast %491 : i32 to index
    %c0_219 = arith.constant 0 : index
    %493 = vector.load %arg2[%492, %c0_219] : memref<800x128xf32, #tpu.memory_space<vmem>>, vector<1x128xf32>
    %494 = arith.addf %488, %493 : vector<1x128xf32>
    %495 = arith.index_cast %404 : i32 to index
    %c15_220 = arith.constant 15 : index
    %496 = memref.load %arg1[%495, %c15_220] : memref<8x16xi32, #tpu.memory_space<smem>>
    %c750_i32_221 = arith.constant 750 : i32
    %497 = arith.addi %c750_i32_221, %496 : i32
    %498 = arith.index_cast %497 : i32 to index
    %c0_222 = arith.constant 0 : index
    %499 = vector.load %arg2[%498, %c0_222] : memref<800x128xf32, #tpu.memory_space<vmem>>, vector<1x128xf32>
    %500 = arith.addf %494, %499 : vector<1x128xf32>
    %501 = arith.index_cast %c4_i32 : i32 to index
    %c0_223 = arith.constant 0 : index
    %502 = vector.load %arg7[%501, %c0_223] : memref<8x128xf32, #tpu.memory_space<vmem>>, vector<1x128xf32>
    tpu.vector_store %arg7[%501, %c0_223], %500 {strides = array<i32>} : memref<8x128xf32, #tpu.memory_space<vmem>>, vector<1x128xf32>,
    %c5_i32 = arith.constant 5 : i32
    %c8_i32_224 = arith.constant 8 : i32
    %503 = arith.muli %arg0, %c8_i32_224 : i32
    %504 = arith.addi %503, %c5_i32 : i32
    %505 = arith.index_cast %504 : i32 to index
    %c0_225 = arith.constant 0 : index
    %506 = memref.load %arg1[%505, %c0_225] : memref<8x16xi32, #tpu.memory_space<smem>>
    %c0_i32_226 = arith.constant 0 : i32
    %507 = arith.addi %c0_i32_226, %506 : i32
    %508 = arith.index_cast %507 : i32 to index
    %c0_227 = arith.constant 0 : index
    %509 = vector.load %arg2[%508, %c0_227] : memref<800x128xf32, #tpu.memory_space<vmem>>, vector<1x128xf32>
    %510 = arith.addf %0, %509 : vector<1x128xf32>
    %511 = arith.index_cast %504 : i32 to index
    %c1_228 = arith.constant 1 : index
    %512 = memref.load %arg1[%511, %c1_228] : memref<8x16xi32, #tpu.memory_space<smem>>
    %c50_i32_229 = arith.constant 50 : i32
    %513 = arith.addi %c50_i32_229, %512 : i32
    %514 = arith.index_cast %513 : i32 to index
    %c0_230 = arith.constant 0 : index
    %515 = vector.load %arg2[%514, %c0_230] : memref<800x128xf32, #tpu.memory_space<vmem>>, vector<1x128xf32>
    %516 = arith.addf %510, %515 : vector<1x128xf32>
    %517 = arith.index_cast %504 : i32 to index
    %c2_231 = arith.constant 2 : index
    %518 = memref.load %arg1[%517, %c2_231] : memref<8x16xi32, #tpu.memory_space<smem>>
    %c100_i32_232 = arith.constant 100 : i32
    %519 = arith.addi %c100_i32_232, %518 : i32
    %520 = arith.index_cast %519 : i32 to index
    %c0_233 = arith.constant 0 : index
    %521 = vector.load %arg2[%520, %c0_233] : memref<800x128xf32, #tpu.memory_space<vmem>>, vector<1x128xf32>
    %522 = arith.addf %516, %521 : vector<1x128xf32>
    %523 = arith.index_cast %504 : i32 to index
    %c3_234 = arith.constant 3 : index
    %524 = memref.load %arg1[%523, %c3_234] : memref<8x16xi32, #tpu.memory_space<smem>>
    %c150_i32_235 = arith.constant 150 : i32
    %525 = arith.addi %c150_i32_235, %524 : i32
    %526 = arith.index_cast %525 : i32 to index
    %c0_236 = arith.constant 0 : index
    %527 = vector.load %arg2[%526, %c0_236] : memref<800x128xf32, #tpu.memory_space<vmem>>, vector<1x128xf32>
    %528 = arith.addf %522, %527 : vector<1x128xf32>
    %529 = arith.index_cast %504 : i32 to index
    %c4_237 = arith.constant 4 : index
    %530 = memref.load %arg1[%529, %c4_237] : memref<8x16xi32, #tpu.memory_space<smem>>
    %c200_i32_238 = arith.constant 200 : i32
    %531 = arith.addi %c200_i32_238, %530 : i32
    %532 = arith.index_cast %531 : i32 to index
    %c0_239 = arith.constant 0 : index
    %533 = vector.load %arg2[%532, %c0_239] : memref<800x128xf32, #tpu.memory_space<vmem>>, vector<1x128xf32>
    %534 = arith.addf %528, %533 : vector<1x128xf32>
    %535 = arith.index_cast %504 : i32 to index
    %c5_240 = arith.constant 5 : index
    %536 = memref.load %arg1[%535, %c5_240] : memref<8x16xi32, #tpu.memory_space<smem>>
    %c250_i32_241 = arith.constant 250 : i32
    %537 = arith.addi %c250_i32_241, %536 : i32
    %538 = arith.index_cast %537 : i32 to index
    %c0_242 = arith.constant 0 : index
    %539 = vector.load %arg2[%538, %c0_242] : memref<800x128xf32, #tpu.memory_space<vmem>>, vector<1x128xf32>
    %540 = arith.addf %534, %539 : vector<1x128xf32>
    %541 = arith.index_cast %504 : i32 to index
    %c6_243 = arith.constant 6 : index
    %542 = memref.load %arg1[%541, %c6_243] : memref<8x16xi32, #tpu.memory_space<smem>>
    %c300_i32_244 = arith.constant 300 : i32
    %543 = arith.addi %c300_i32_244, %542 : i32
    %544 = arith.index_cast %543 : i32 to index
    %c0_245 = arith.constant 0 : index
    %545 = vector.load %arg2[%544, %c0_245] : memref<800x128xf32, #tpu.memory_space<vmem>>, vector<1x128xf32>
    %546 = arith.addf %540, %545 : vector<1x128xf32>
    %547 = arith.index_cast %504 : i32 to index
    %c7_246 = arith.constant 7 : index
    %548 = memref.load %arg1[%547, %c7_246] : memref<8x16xi32, #tpu.memory_space<smem>>
    %c350_i32_247 = arith.constant 350 : i32
    %549 = arith.addi %c350_i32_247, %548 : i32
    %550 = arith.index_cast %549 : i32 to index
    %c0_248 = arith.constant 0 : index
    %551 = vector.load %arg2[%550, %c0_248] : memref<800x128xf32, #tpu.memory_space<vmem>>, vector<1x128xf32>
    %552 = arith.addf %546, %551 : vector<1x128xf32>
    %553 = arith.index_cast %504 : i32 to index
    %c8_249 = arith.constant 8 : index
    %554 = memref.load %arg1[%553, %c8_249] : memref<8x16xi32, #tpu.memory_space<smem>>
    %c400_i32_250 = arith.constant 400 : i32
    %555 = arith.addi %c400_i32_250, %554 : i32
    %556 = arith.index_cast %555 : i32 to index
    %c0_251 = arith.constant 0 : index
    %557 = vector.load %arg2[%556, %c0_251] : memref<800x128xf32, #tpu.memory_space<vmem>>, vector<1x128xf32>
    %558 = arith.addf %552, %557 : vector<1x128xf32>
    %559 = arith.index_cast %504 : i32 to index
    %c9_252 = arith.constant 9 : index
    %560 = memref.load %arg1[%559, %c9_252] : memref<8x16xi32, #tpu.memory_space<smem>>
    %c450_i32_253 = arith.constant 450 : i32
    %561 = arith.addi %c450_i32_253, %560 : i32
    %562 = arith.index_cast %561 : i32 to index
    %c0_254 = arith.constant 0 : index
    %563 = vector.load %arg2[%562, %c0_254] : memref<800x128xf32, #tpu.memory_space<vmem>>, vector<1x128xf32>
    %564 = arith.addf %558, %563 : vector<1x128xf32>
    %565 = arith.index_cast %504 : i32 to index
    %c10_255 = arith.constant 10 : index
    %566 = memref.load %arg1[%565, %c10_255] : memref<8x16xi32, #tpu.memory_space<smem>>
    %c500_i32_256 = arith.constant 500 : i32
    %567 = arith.addi %c500_i32_256, %566 : i32
    %568 = arith.index_cast %567 : i32 to index
    %c0_257 = arith.constant 0 : index
    %569 = vector.load %arg2[%568, %c0_257] : memref<800x128xf32, #tpu.memory_space<vmem>>, vector<1x128xf32>
    %570 = arith.addf %564, %569 : vector<1x128xf32>
    %571 = arith.index_cast %504 : i32 to index
    %c11_258 = arith.constant 11 : index
    %572 = memref.load %arg1[%571, %c11_258] : memref<8x16xi32, #tpu.memory_space<smem>>
    %c550_i32_259 = arith.constant 550 : i32
    %573 = arith.addi %c550_i32_259, %572 : i32
    %574 = arith.index_cast %573 : i32 to index
    %c0_260 = arith.constant 0 : index
    %575 = vector.load %arg2[%574, %c0_260] : memref<800x128xf32, #tpu.memory_space<vmem>>, vector<1x128xf32>
    %576 = arith.addf %570, %575 : vector<1x128xf32>
    %577 = arith.index_cast %504 : i32 to index
    %c12_261 = arith.constant 12 : index
    %578 = memref.load %arg1[%577, %c12_261] : memref<8x16xi32, #tpu.memory_space<smem>>
    %c600_i32_262 = arith.constant 600 : i32
    %579 = arith.addi %c600_i32_262, %578 : i32
    %580 = arith.index_cast %579 : i32 to index
    %c0_263 = arith.constant 0 : index
    %581 = vector.load %arg2[%580, %c0_263] : memref<800x128xf32, #tpu.memory_space<vmem>>, vector<1x128xf32>
    %582 = arith.addf %576, %581 : vector<1x128xf32>
    %583 = arith.index_cast %504 : i32 to index
    %c13_264 = arith.constant 13 : index
    %584 = memref.load %arg1[%583, %c13_264] : memref<8x16xi32, #tpu.memory_space<smem>>
    %c650_i32_265 = arith.constant 650 : i32
    %585 = arith.addi %c650_i32_265, %584 : i32
    %586 = arith.index_cast %585 : i32 to index
    %c0_266 = arith.constant 0 : index
    %587 = vector.load %arg2[%586, %c0_266] : memref<800x128xf32, #tpu.memory_space<vmem>>, vector<1x128xf32>
    %588 = arith.addf %582, %587 : vector<1x128xf32>
    %589 = arith.index_cast %504 : i32 to index
    %c14_267 = arith.constant 14 : index
    %590 = memref.load %arg1[%589, %c14_267] : memref<8x16xi32, #tpu.memory_space<smem>>
    %c700_i32_268 = arith.constant 700 : i32
    %591 = arith.addi %c700_i32_268, %590 : i32
    %592 = arith.index_cast %591 : i32 to index
    %c0_269 = arith.constant 0 : index
    %593 = vector.load %arg2[%592, %c0_269] : memref<800x128xf32, #tpu.memory_space<vmem>>, vector<1x128xf32>
    %594 = arith.addf %588, %593 : vector<1x128xf32>
    %595 = arith.index_cast %504 : i32 to index
    %c15_270 = arith.constant 15 : index
    %596 = memref.load %arg1[%595, %c15_270] : memref<8x16xi32, #tpu.memory_space<smem>>
    %c750_i32_271 = arith.constant 750 : i32
    %597 = arith.addi %c750_i32_271, %596 : i32
    %598 = arith.index_cast %597 : i32 to index
    %c0_272 = arith.constant 0 : index
    %599 = vector.load %arg2[%598, %c0_272] : memref<800x128xf32, #tpu.memory_space<vmem>>, vector<1x128xf32>
    %600 = arith.addf %594, %599 : vector<1x128xf32>
    %601 = arith.index_cast %c5_i32 : i32 to index
    %c0_273 = arith.constant 0 : index
    %602 = vector.load %arg7[%601, %c0_273] : memref<8x128xf32, #tpu.memory_space<vmem>>, vector<1x128xf32>
    tpu.vector_store %arg7[%601, %c0_273], %600 {strides = array<i32>} : memref<8x128xf32, #tpu.memory_space<vmem>>, vector<1x128xf32>,
    %c6_i32 = arith.constant 6 : i32
    %c8_i32_274 = arith.constant 8 : i32
    %603 = arith.muli %arg0, %c8_i32_274 : i32
    %604 = arith.addi %603, %c6_i32 : i32
    %605 = arith.index_cast %604 : i32 to index
    %c0_275 = arith.constant 0 : index
    %606 = memref.load %arg1[%605, %c0_275] : memref<8x16xi32, #tpu.memory_space<smem>>
    %c0_i32_276 = arith.constant 0 : i32
    %607 = arith.addi %c0_i32_276, %606 : i32
    %608 = arith.index_cast %607 : i32 to index
    %c0_277 = arith.constant 0 : index
    %609 = vector.load %arg2[%608, %c0_277] : memref<800x128xf32, #tpu.memory_space<vmem>>, vector<1x128xf32>
    %610 = arith.addf %0, %609 : vector<1x128xf32>
    %611 = arith.index_cast %604 : i32 to index
    %c1_278 = arith.constant 1 : index
    %612 = memref.load %arg1[%611, %c1_278] : memref<8x16xi32, #tpu.memory_space<smem>>
    %c50_i32_279 = arith.constant 50 : i32
    %613 = arith.addi %c50_i32_279, %612 : i32
    %614 = arith.index_cast %613 : i32 to index
    %c0_280 = arith.constant 0 : index
    %615 = vector.load %arg2[%614, %c0_280] : memref<800x128xf32, #tpu.memory_space<vmem>>, vector<1x128xf32>
    %616 = arith.addf %610, %615 : vector<1x128xf32>
    %617 = arith.index_cast %604 : i32 to index
    %c2_281 = arith.constant 2 : index
    %618 = memref.load %arg1[%617, %c2_281] : memref<8x16xi32, #tpu.memory_space<smem>>
    %c100_i32_282 = arith.constant 100 : i32
    %619 = arith.addi %c100_i32_282, %618 : i32
    %620 = arith.index_cast %619 : i32 to index
    %c0_283 = arith.constant 0 : index
    %621 = vector.load %arg2[%620, %c0_283] : memref<800x128xf32, #tpu.memory_space<vmem>>, vector<1x128xf32>
    %622 = arith.addf %616, %621 : vector<1x128xf32>
    %623 = arith.index_cast %604 : i32 to index
    %c3_284 = arith.constant 3 : index
    %624 = memref.load %arg1[%623, %c3_284] : memref<8x16xi32, #tpu.memory_space<smem>>
    %c150_i32_285 = arith.constant 150 : i32
    %625 = arith.addi %c150_i32_285, %624 : i32
    %626 = arith.index_cast %625 : i32 to index
    %c0_286 = arith.constant 0 : index
    %627 = vector.load %arg2[%626, %c0_286] : memref<800x128xf32, #tpu.memory_space<vmem>>, vector<1x128xf32>
    %628 = arith.addf %622, %627 : vector<1x128xf32>
    %629 = arith.index_cast %604 : i32 to index
    %c4_287 = arith.constant 4 : index
    %630 = memref.load %arg1[%629, %c4_287] : memref<8x16xi32, #tpu.memory_space<smem>>
    %c200_i32_288 = arith.constant 200 : i32
    %631 = arith.addi %c200_i32_288, %630 : i32
    %632 = arith.index_cast %631 : i32 to index
    %c0_289 = arith.constant 0 : index
    %633 = vector.load %arg2[%632, %c0_289] : memref<800x128xf32, #tpu.memory_space<vmem>>, vector<1x128xf32>
    %634 = arith.addf %628, %633 : vector<1x128xf32>
    %635 = arith.index_cast %604 : i32 to index
    %c5_290 = arith.constant 5 : index
    %636 = memref.load %arg1[%635, %c5_290] : memref<8x16xi32, #tpu.memory_space<smem>>
    %c250_i32_291 = arith.constant 250 : i32
    %637 = arith.addi %c250_i32_291, %636 : i32
    %638 = arith.index_cast %637 : i32 to index
    %c0_292 = arith.constant 0 : index
    %639 = vector.load %arg2[%638, %c0_292] : memref<800x128xf32, #tpu.memory_space<vmem>>, vector<1x128xf32>
    %640 = arith.addf %634, %639 : vector<1x128xf32>
    %641 = arith.index_cast %604 : i32 to index
    %c6_293 = arith.constant 6 : index
    %642 = memref.load %arg1[%641, %c6_293] : memref<8x16xi32, #tpu.memory_space<smem>>
    %c300_i32_294 = arith.constant 300 : i32
    %643 = arith.addi %c300_i32_294, %642 : i32
    %644 = arith.index_cast %643 : i32 to index
    %c0_295 = arith.constant 0 : index
    %645 = vector.load %arg2[%644, %c0_295] : memref<800x128xf32, #tpu.memory_space<vmem>>, vector<1x128xf32>
    %646 = arith.addf %640, %645 : vector<1x128xf32>
    %647 = arith.index_cast %604 : i32 to index
    %c7_296 = arith.constant 7 : index
    %648 = memref.load %arg1[%647, %c7_296] : memref<8x16xi32, #tpu.memory_space<smem>>
    %c350_i32_297 = arith.constant 350 : i32
    %649 = arith.addi %c350_i32_297, %648 : i32
    %650 = arith.index_cast %649 : i32 to index
    %c0_298 = arith.constant 0 : index
    %651 = vector.load %arg2[%650, %c0_298] : memref<800x128xf32, #tpu.memory_space<vmem>>, vector<1x128xf32>
    %652 = arith.addf %646, %651 : vector<1x128xf32>
    %653 = arith.index_cast %604 : i32 to index
    %c8_299 = arith.constant 8 : index
    %654 = memref.load %arg1[%653, %c8_299] : memref<8x16xi32, #tpu.memory_space<smem>>
    %c400_i32_300 = arith.constant 400 : i32
    %655 = arith.addi %c400_i32_300, %654 : i32
    %656 = arith.index_cast %655 : i32 to index
    %c0_301 = arith.constant 0 : index
    %657 = vector.load %arg2[%656, %c0_301] : memref<800x128xf32, #tpu.memory_space<vmem>>, vector<1x128xf32>
    %658 = arith.addf %652, %657 : vector<1x128xf32>
    %659 = arith.index_cast %604 : i32 to index
    %c9_302 = arith.constant 9 : index
    %660 = memref.load %arg1[%659, %c9_302] : memref<8x16xi32, #tpu.memory_space<smem>>
    %c450_i32_303 = arith.constant 450 : i32
    %661 = arith.addi %c450_i32_303, %660 : i32
    %662 = arith.index_cast %661 : i32 to index
    %c0_304 = arith.constant 0 : index
    %663 = vector.load %arg2[%662, %c0_304] : memref<800x128xf32, #tpu.memory_space<vmem>>, vector<1x128xf32>
    %664 = arith.addf %658, %663 : vector<1x128xf32>
    %665 = arith.index_cast %604 : i32 to index
    %c10_305 = arith.constant 10 : index
    %666 = memref.load %arg1[%665, %c10_305] : memref<8x16xi32, #tpu.memory_space<smem>>
    %c500_i32_306 = arith.constant 500 : i32
    %667 = arith.addi %c500_i32_306, %666 : i32
    %668 = arith.index_cast %667 : i32 to index
    %c0_307 = arith.constant 0 : index
    %669 = vector.load %arg2[%668, %c0_307] : memref<800x128xf32, #tpu.memory_space<vmem>>, vector<1x128xf32>
    %670 = arith.addf %664, %669 : vector<1x128xf32>
    %671 = arith.index_cast %604 : i32 to index
    %c11_308 = arith.constant 11 : index
    %672 = memref.load %arg1[%671, %c11_308] : memref<8x16xi32, #tpu.memory_space<smem>>
    %c550_i32_309 = arith.constant 550 : i32
    %673 = arith.addi %c550_i32_309, %672 : i32
    %674 = arith.index_cast %673 : i32 to index
    %c0_310 = arith.constant 0 : index
    %675 = vector.load %arg2[%674, %c0_310] : memref<800x128xf32, #tpu.memory_space<vmem>>, vector<1x128xf32>
    %676 = arith.addf %670, %675 : vector<1x128xf32>
    %677 = arith.index_cast %604 : i32 to index
    %c12_311 = arith.constant 12 : index
    %678 = memref.load %arg1[%677, %c12_311] : memref<8x16xi32, #tpu.memory_space<smem>>
    %c600_i32_312 = arith.constant 600 : i32
    %679 = arith.addi %c600_i32_312, %678 : i32
    %680 = arith.index_cast %679 : i32 to index
    %c0_313 = arith.constant 0 : index
    %681 = vector.load %arg2[%680, %c0_313] : memref<800x128xf32, #tpu.memory_space<vmem>>, vector<1x128xf32>
    %682 = arith.addf %676, %681 : vector<1x128xf32>
    %683 = arith.index_cast %604 : i32 to index
    %c13_314 = arith.constant 13 : index
    %684 = memref.load %arg1[%683, %c13_314] : memref<8x16xi32, #tpu.memory_space<smem>>
    %c650_i32_315 = arith.constant 650 : i32
    %685 = arith.addi %c650_i32_315, %684 : i32
    %686 = arith.index_cast %685 : i32 to index
    %c0_316 = arith.constant 0 : index
    %687 = vector.load %arg2[%686, %c0_316] : memref<800x128xf32, #tpu.memory_space<vmem>>, vector<1x128xf32>
    %688 = arith.addf %682, %687 : vector<1x128xf32>
    %689 = arith.index_cast %604 : i32 to index
    %c14_317 = arith.constant 14 : index
    %690 = memref.load %arg1[%689, %c14_317] : memref<8x16xi32, #tpu.memory_space<smem>>
    %c700_i32_318 = arith.constant 700 : i32
    %691 = arith.addi %c700_i32_318, %690 : i32
    %692 = arith.index_cast %691 : i32 to index
    %c0_319 = arith.constant 0 : index
    %693 = vector.load %arg2[%692, %c0_319] : memref<800x128xf32, #tpu.memory_space<vmem>>, vector<1x128xf32>
    %694 = arith.addf %688, %693 : vector<1x128xf32>
    %695 = arith.index_cast %604 : i32 to index
    %c15_320 = arith.constant 15 : index
    %696 = memref.load %arg1[%695, %c15_320] : memref<8x16xi32, #tpu.memory_space<smem>>
    %c750_i32_321 = arith.constant 750 : i32
    %697 = arith.addi %c750_i32_321, %696 : i32
    %698 = arith.index_cast %697 : i32 to index
    %c0_322 = arith.constant 0 : index
    %699 = vector.load %arg2[%698, %c0_322] : memref<800x128xf32, #tpu.memory_space<vmem>>, vector<1x128xf32>
    %700 = arith.addf %694, %699 : vector<1x128xf32>
    %701 = arith.index_cast %c6_i32 : i32 to index
    %c0_323 = arith.constant 0 : index
    %702 = vector.load %arg7[%701, %c0_323] : memref<8x128xf32, #tpu.memory_space<vmem>>, vector<1x128xf32>
    tpu.vector_store %arg7[%701, %c0_323], %700 {strides = array<i32>} : memref<8x128xf32, #tpu.memory_space<vmem>>, vector<1x128xf32>,
    %c7_i32 = arith.constant 7 : i32
    %c8_i32_324 = arith.constant 8 : i32
    %703 = arith.muli %arg0, %c8_i32_324 : i32
    %704 = arith.addi %703, %c7_i32 : i32
    %705 = arith.index_cast %704 : i32 to index
    %c0_325 = arith.constant 0 : index
    %706 = memref.load %arg1[%705, %c0_325] : memref<8x16xi32, #tpu.memory_space<smem>>
    %c0_i32_326 = arith.constant 0 : i32
    %707 = arith.addi %c0_i32_326, %706 : i32
    %708 = arith.index_cast %707 : i32 to index
    %c0_327 = arith.constant 0 : index
    %709 = vector.load %arg2[%708, %c0_327] : memref<800x128xf32, #tpu.memory_space<vmem>>, vector<1x128xf32>
    %710 = arith.addf %0, %709 : vector<1x128xf32>
    %711 = arith.index_cast %704 : i32 to index
    %c1_328 = arith.constant 1 : index
    %712 = memref.load %arg1[%711, %c1_328] : memref<8x16xi32, #tpu.memory_space<smem>>
    %c50_i32_329 = arith.constant 50 : i32
    %713 = arith.addi %c50_i32_329, %712 : i32
    %714 = arith.index_cast %713 : i32 to index
    %c0_330 = arith.constant 0 : index
    %715 = vector.load %arg2[%714, %c0_330] : memref<800x128xf32, #tpu.memory_space<vmem>>, vector<1x128xf32>
    %716 = arith.addf %710, %715 : vector<1x128xf32>
    %717 = arith.index_cast %704 : i32 to index
    %c2_331 = arith.constant 2 : index
    %718 = memref.load %arg1[%717, %c2_331] : memref<8x16xi32, #tpu.memory_space<smem>>
    %c100_i32_332 = arith.constant 100 : i32
    %719 = arith.addi %c100_i32_332, %718 : i32
    %720 = arith.index_cast %719 : i32 to index
    %c0_333 = arith.constant 0 : index
    %721 = vector.load %arg2[%720, %c0_333] : memref<800x128xf32, #tpu.memory_space<vmem>>, vector<1x128xf32>
    %722 = arith.addf %716, %721 : vector<1x128xf32>
    %723 = arith.index_cast %704 : i32 to index
    %c3_334 = arith.constant 3 : index
    %724 = memref.load %arg1[%723, %c3_334] : memref<8x16xi32, #tpu.memory_space<smem>>
    %c150_i32_335 = arith.constant 150 : i32
    %725 = arith.addi %c150_i32_335, %724 : i32
    %726 = arith.index_cast %725 : i32 to index
    %c0_336 = arith.constant 0 : index
    %727 = vector.load %arg2[%726, %c0_336] : memref<800x128xf32, #tpu.memory_space<vmem>>, vector<1x128xf32>
    %728 = arith.addf %722, %727 : vector<1x128xf32>
    %729 = arith.index_cast %704 : i32 to index
    %c4_337 = arith.constant 4 : index
    %730 = memref.load %arg1[%729, %c4_337] : memref<8x16xi32, #tpu.memory_space<smem>>
    %c200_i32_338 = arith.constant 200 : i32
    %731 = arith.addi %c200_i32_338, %730 : i32
    %732 = arith.index_cast %731 : i32 to index
    %c0_339 = arith.constant 0 : index
    %733 = vector.load %arg2[%732, %c0_339] : memref<800x128xf32, #tpu.memory_space<vmem>>, vector<1x128xf32>
    %734 = arith.addf %728, %733 : vector<1x128xf32>
    %735 = arith.index_cast %704 : i32 to index
    %c5_340 = arith.constant 5 : index
    %736 = memref.load %arg1[%735, %c5_340] : memref<8x16xi32, #tpu.memory_space<smem>>
    %c250_i32_341 = arith.constant 250 : i32
    %737 = arith.addi %c250_i32_341, %736 : i32
    %738 = arith.index_cast %737 : i32 to index
    %c0_342 = arith.constant 0 : index
    %739 = vector.load %arg2[%738, %c0_342] : memref<800x128xf32, #tpu.memory_space<vmem>>, vector<1x128xf32>
    %740 = arith.addf %734, %739 : vector<1x128xf32>
    %741 = arith.index_cast %704 : i32 to index
    %c6_343 = arith.constant 6 : index
    %742 = memref.load %arg1[%741, %c6_343] : memref<8x16xi32, #tpu.memory_space<smem>>
    %c300_i32_344 = arith.constant 300 : i32
    %743 = arith.addi %c300_i32_344, %742 : i32
    %744 = arith.index_cast %743 : i32 to index
    %c0_345 = arith.constant 0 : index
    %745 = vector.load %arg2[%744, %c0_345] : memref<800x128xf32, #tpu.memory_space<vmem>>, vector<1x128xf32>
    %746 = arith.addf %740, %745 : vector<1x128xf32>
    %747 = arith.index_cast %704 : i32 to index
    %c7_346 = arith.constant 7 : index
    %748 = memref.load %arg1[%747, %c7_346] : memref<8x16xi32, #tpu.memory_space<smem>>
    %c350_i32_347 = arith.constant 350 : i32
    %749 = arith.addi %c350_i32_347, %748 : i32
    %750 = arith.index_cast %749 : i32 to index
    %c0_348 = arith.constant 0 : index
    %751 = vector.load %arg2[%750, %c0_348] : memref<800x128xf32, #tpu.memory_space<vmem>>, vector<1x128xf32>
    %752 = arith.addf %746, %751 : vector<1x128xf32>
    %753 = arith.index_cast %704 : i32 to index
    %c8_349 = arith.constant 8 : index
    %754 = memref.load %arg1[%753, %c8_349] : memref<8x16xi32, #tpu.memory_space<smem>>
    %c400_i32_350 = arith.constant 400 : i32
    %755 = arith.addi %c400_i32_350, %754 : i32
    %756 = arith.index_cast %755 : i32 to index
    %c0_351 = arith.constant 0 : index
    %757 = vector.load %arg2[%756, %c0_351] : memref<800x128xf32, #tpu.memory_space<vmem>>, vector<1x128xf32>
    %758 = arith.addf %752, %757 : vector<1x128xf32>
    %759 = arith.index_cast %704 : i32 to index
    %c9_352 = arith.constant 9 : index
    %760 = memref.load %arg1[%759, %c9_352] : memref<8x16xi32, #tpu.memory_space<smem>>
    %c450_i32_353 = arith.constant 450 : i32
    %761 = arith.addi %c450_i32_353, %760 : i32
    %762 = arith.index_cast %761 : i32 to index
    %c0_354 = arith.constant 0 : index
    %763 = vector.load %arg2[%762, %c0_354] : memref<800x128xf32, #tpu.memory_space<vmem>>, vector<1x128xf32>
    %764 = arith.addf %758, %763 : vector<1x128xf32>
    %765 = arith.index_cast %704 : i32 to index
    %c10_355 = arith.constant 10 : index
    %766 = memref.load %arg1[%765, %c10_355] : memref<8x16xi32, #tpu.memory_space<smem>>
    %c500_i32_356 = arith.constant 500 : i32
    %767 = arith.addi %c500_i32_356, %766 : i32
    %768 = arith.index_cast %767 : i32 to index
    %c0_357 = arith.constant 0 : index
    %769 = vector.load %arg2[%768, %c0_357] : memref<800x128xf32, #tpu.memory_space<vmem>>, vector<1x128xf32>
    %770 = arith.addf %764, %769 : vector<1x128xf32>
    %771 = arith.index_cast %704 : i32 to index
    %c11_358 = arith.constant 11 : index
    %772 = memref.load %arg1[%771, %c11_358] : memref<8x16xi32, #tpu.memory_space<smem>>
    %c550_i32_359 = arith.constant 550 : i32
    %773 = arith.addi %c550_i32_359, %772 : i32
    %774 = arith.index_cast %773 : i32 to index
    %c0_360 = arith.constant 0 : index
    %775 = vector.load %arg2[%774, %c0_360] : memref<800x128xf32, #tpu.memory_space<vmem>>, vector<1x128xf32>
    %776 = arith.addf %770, %775 : vector<1x128xf32>
    %777 = arith.index_cast %704 : i32 to index
    %c12_361 = arith.constant 12 : index
    %778 = memref.load %arg1[%777, %c12_361] : memref<8x16xi32, #tpu.memory_space<smem>>
    %c600_i32_362 = arith.constant 600 : i32
    %779 = arith.addi %c600_i32_362, %778 : i32
    %780 = arith.index_cast %779 : i32 to index
    %c0_363 = arith.constant 0 : index
    %781 = vector.load %arg2[%780, %c0_363] : memref<800x128xf32, #tpu.memory_space<vmem>>, vector<1x128xf32>
    %782 = arith.addf %776, %781 : vector<1x128xf32>
    %783 = arith.index_cast %704 : i32 to index
    %c13_364 = arith.constant 13 : index
    %784 = memref.load %arg1[%783, %c13_364] : memref<8x16xi32, #tpu.memory_space<smem>>
    %c650_i32_365 = arith.constant 650 : i32
    %785 = arith.addi %c650_i32_365, %784 : i32
    %786 = arith.index_cast %785 : i32 to index
    %c0_366 = arith.constant 0 : index
    %787 = vector.load %arg2[%786, %c0_366] : memref<800x128xf32, #tpu.memory_space<vmem>>, vector<1x128xf32>
    %788 = arith.addf %782, %787 : vector<1x128xf32>
    %789 = arith.index_cast %704 : i32 to index
    %c14_367 = arith.constant 14 : index
    %790 = memref.load %arg1[%789, %c14_367] : memref<8x16xi32, #tpu.memory_space<smem>>
    %c700_i32_368 = arith.constant 700 : i32
    %791 = arith.addi %c700_i32_368, %790 : i32
    %792 = arith.index_cast %791 : i32 to index
    %c0_369 = arith.constant 0 : index
    %793 = vector.load %arg2[%792, %c0_369] : memref<800x128xf32, #tpu.memory_space<vmem>>, vector<1x128xf32>
    %794 = arith.addf %788, %793 : vector<1x128xf32>
    %795 = arith.index_cast %704 : i32 to index
    %c15_370 = arith.constant 15 : index
    %796 = memref.load %arg1[%795, %c15_370] : memref<8x16xi32, #tpu.memory_space<smem>>
    %c750_i32_371 = arith.constant 750 : i32
    %797 = arith.addi %c750_i32_371, %796 : i32
    %798 = arith.index_cast %797 : i32 to index
    %c0_372 = arith.constant 0 : index
    %799 = vector.load %arg2[%798, %c0_372] : memref<800x128xf32, #tpu.memory_space<vmem>>, vector<1x128xf32>
    %800 = arith.addf %794, %799 : vector<1x128xf32>
    %801 = arith.index_cast %c7_i32 : i32 to index
    %c0_373 = arith.constant 0 : index
    %802 = vector.load %arg7[%801, %c0_373] : memref<8x128xf32, #tpu.memory_space<vmem>>, vector<1x128xf32>
    tpu.vector_store %arg7[%801, %c0_373], %800 {strides = array<i32>} : memref<8x128xf32, #tpu.memory_space<vmem>>, vector<1x128xf32>,
    %c8_i32_374 = arith.constant 8 : i32
    %c0_375 = arith.constant 0 : index
    %c0_376 = arith.constant 0 : index
    %803 = vector.load %arg7[%c0_375, %c0_376] : memref<8x128xf32, #tpu.memory_space<vmem>>, vector<8x128xf32>
    %c127_i32 = arith.constant 127 : i32
    %804 = tpu.dynamic_rotate %803 by %c127_i32 dim 1 : vector<8x128xf32>, i32 -> vector<8x128xf32>
    %805 = arith.maximumf %803, %804 : vector<8x128xf32>
    %806 = arith.truncf %805 : vector<8x128xf32> to vector<8x128xbf16>
    %c0_377 = arith.constant 0 : index
    %c0_378 = arith.constant 0 : index
    %807 = vector.load %arg3[%c0_377, %c0_378] : memref<128x128xbf16, #tpu.memory_space<vmem>>, vector<128x128xbf16>
    %cst = arith.constant dense<0.000000e+00> : vector<8x128xf32>
    %808 = tpu.matmul %806, %807, %cst {dimension_numbers = #tpu.dot_dimension_numbers<[1], [0], [0], [1], [0, 0, 1, 1], [], []>} : vector<8x128xbf16>, vector<128x128xbf16>, vector<8x128xf32> -> vector<8x128xf32>
    %809 = vector.broadcast %1 : vector<1x128xf32> to vector<8x128xf32>
    %810 = arith.addf %808, %809 : vector<8x128xf32>
    %cst_379 = arith.constant 0.000000e+00 : f32
    %811 = vector.broadcast %cst_379 : f32 to vector<8x128xf32>
    %812 = arith.maximumf %810, %811 : vector<8x128xf32>
    %813 = arith.truncf %812 : vector<8x128xf32> to vector<8x128xbf16>
    %c0_380 = arith.constant 0 : index
    %c0_381 = arith.constant 0 : index
    %814 = vector.load %arg4[%c0_380, %c0_381] : memref<128x128xbf16, #tpu.memory_space<vmem>>, vector<128x128xbf16>
    %cst_382 = arith.constant dense<0.000000e+00> : vector<8x128xf32>
    %815 = tpu.matmul %813, %814, %cst_382 {dimension_numbers = #tpu.dot_dimension_numbers<[1], [0], [0], [1], [0, 0, 1, 1], [], []>} : vector<8x128xbf16>, vector<128x128xbf16>, vector<8x128xf32> -> vector<8x128xf32>
    %816 = vector.broadcast %2 : vector<1x128xf32> to vector<8x128xf32>
    %817 = arith.addf %815, %816 : vector<8x128xf32>
    %cst_383 = arith.constant 0.000000e+00 : f32
    %818 = vector.broadcast %cst_383 : f32 to vector<8x128xf32>
    %819 = arith.subf %818, %817 : vector<8x128xf32>
    %820 = math.exp %819 : vector<8x128xf32>
    %cst_384 = arith.constant 1.000000e+00 : f32
    %821 = vector.broadcast %cst_384 : f32 to vector<8x128xf32>
    %822 = arith.addf %821, %820 : vector<8x128xf32>
    %823 = tpu.reciprocal %822 {approx = true} : vector<8x128xf32> -> vector<8x128xf32>
    %824 = arith.truncf %823 : vector<8x128xf32> to vector<8x128xbf16>
    %c0_385 = arith.constant 0 : index
    %c0_386 = arith.constant 0 : index
    %825 = vector.load %arg6[%c0_385, %c0_386] : memref<8x128xbf16, #tpu.memory_space<vmem>>, vector<8x128xbf16>
    tpu.vector_store %arg6[%c0_385, %c0_386], %824 {strides = array<i32>} : memref<8x128xbf16, #tpu.memory_space<vmem>>, vector<8x128xbf16>,
    return
  }
  func.func @transform_0(%arg0: i32, %arg1: memref<8x16xi32, #tpu.memory_space<smem>>) -> (i32, i32) {
    %c0_i32 = arith.constant 0 : i32
    %c0_i32_0 = arith.constant 0 : i32
    %c0_i32_1 = arith.constant 0 : i32
    return %c0_i32, %c0_i32_0 : i32, i32
  }
  func.func @transform_1(%arg0: i32, %arg1: memref<8x16xi32, #tpu.memory_space<smem>>) -> (i32, i32) {
    %c0_i32 = arith.constant 0 : i32
    %c0_i32_0 = arith.constant 0 : i32
    %c0_i32_1 = arith.constant 0 : i32
    return %c0_i32, %c0_i32_0 : i32, i32
  }
  func.func @transform_2(%arg0: i32, %arg1: memref<8x16xi32, #tpu.memory_space<smem>>) -> (i32, i32) {
    %c0_i32 = arith.constant 0 : i32
    %c0_i32_0 = arith.constant 0 : i32
    %c0_i32_1 = arith.constant 0 : i32
    return %c0_i32, %c0_i32_0 : i32, i32
  }
  func.func @transform_3(%arg0: i32, %arg1: memref<8x16xi32, #tpu.memory_space<smem>>) -> (i32, i32) {
    %c0_i32 = arith.constant 0 : i32
    %c0_i32_0 = arith.constant 0 : i32
    %c0_i32_1 = arith.constant 0 : i32
    return %c0_i32, %c0_i32_0 : i32, i32
  }
  func.func @transform_4(%arg0: i32, %arg1: memref<8x16xi32, #tpu.memory_space<smem>>) -> (i32, i32) {
    %c0_i32 = arith.constant 0 : i32
    %c0_i32_0 = arith.constant 0 : i32
    return %arg0, %c0_i32 : i32, i32
  }
}

</mosaic_0001>

<llo_original>
// kernel: cnn_forward.1
$region0: #{cnn_forward.1}
  #allocation0 [shape = 'u32[]', space=smem, size = 0x4, offset = 0x4, fixed_abs, tag = 'smem constant byte address 0x4 - core index']
  #allocation1 [shape = 'u32[72,128]{1,0:T(1,128)}', space=vmem, size = 0x9000, scoped, tag = 'internal scratch']
  #allocation2 [shape = 'f32[8,128]{1,0:T(8,128)}', space=vmem, size = 0x1000, scoped, tag = 'scratch operand']
  #allocation3 [shape = 's32[1]{0}', space=sflag, size = 0x4, scoped, tag = 'scoped memory for cnn_forward.1']
  #allocation4 [shape = 'u8[4096]{0}', space=smem, size = 0x1000, scoped, tag = 'prefetched SMEM operand 0']
  %s0 = inlined_call_operand.vmem [shape: s32[8,16], index: 0, kind: input, shape index: {}]
  %s1 = inlined_call_operand.hbm [shape: f32[800,128], index: 1, kind: input, shape index: {}]
  %s2 = inlined_call_operand.hbm [shape: bf16[128,128], index: 2, kind: input, shape index: {}]
  %s3 = inlined_call_operand.hbm [shape: bf16[128,128], index: 3, kind: input, shape index: {}]
  %s4 = inlined_call_operand.vmem [shape: f32[8,128], index: 4, kind: input, shape index: {}]
  %s5 = inlined_call_operand.vmem [shape: bf16[8,128], index: 5, kind: output, shape index: {}]
  %s6 = sld [smem:[#allocation0]]
  $region38: #{cnn_forward.1} parent=0
    _
  %s8 = ssub.s32 1, %s6
  %s9 = scalar_select 0, %s8, %s6
  %s11 = sshll.u32 %s0, 4
  %s12 = int_to_ptr.vmem [resolvable:$true] %s11
  %14 = dma.vmem_to_smem %s12, 128, [#allocation4], [#allocation3]
  %16 = dma.done [#allocation3], 128
  %17 = sfence
  $region1: #{cnn_forward.1} parent=0
    #allocation5 [shape = 'u8[409600]{0}', space=vmem, size = 0x64000, scoped, tag = 'input window, operand 1, single buffered']
    #allocation6 [shape = 's32[1]{0}', space=sflag, size = 0x4, scoped, tag = 'scoped memory for cnn_forward.1']
    #allocation7 [shape = 'u8[32768]{0}', space=vmem, size = 0x8000, scoped, tag = 'input window, operand 2, single buffered']
    #allocation8 [shape = 's32[1]{0}', space=sflag, size = 0x4, scoped, tag = 'scoped memory for cnn_forward.1']
    #allocation9 [shape = 'u8[32768]{0}', space=vmem, size = 0x8000, scoped, tag = 'input window, operand 3, single buffered']
    %18 = vsyncpa [#allocation6], 0
    %19 = vsyncpa [#allocation8], 0
    // Predicated region
    $region2: #{cnn_forward.1} parent=1 // pred_check
      _
    $region3: #{cnn_forward.1} parent=1 // pred_check_branch
      %21 = sbr.rel (0) target = $region5
    $region4: #{cnn_forward.1} parent=1 // pred_region
      %23 = vsyncadd [#allocation6], 0
      %s24 = sshll.u32 %s1, 4
      %s25 = int_to_ptr.hbm [resolvable:$true] %s24
      %s26 = sshll.u32 [#allocation5], 4
      %s27 = int_to_ptr.vmem [resolvable:$true] %s26
      %32 = dma.hbm_to_vmem [thread:$0]  %s25, 12800, %s27, [#allocation6], 128, 128, 8
    $region5: #{cnn_forward.1} parent=1 // pred_fallthru
      _
    // Predicated region
    $region6: #{cnn_forward.1} parent=1 // pred_check
      _
    $region7: #{cnn_forward.1} parent=1 // pred_check_branch
      %34 = sbr.rel (0) target = $region9
    $region8: #{cnn_forward.1} parent=1 // pred_region
      %36 = vsyncadd [#allocation8], 0
      %s37 = sshll.u32 %s2, 4
      %s38 = int_to_ptr.hbm [resolvable:$true] %s37
      %s39 = sshll.u32 [#allocation7], 4
      %s40 = int_to_ptr.vmem [resolvable:$true] %s39
      %45 = dma.hbm_to_vmem [thread:$0]  %s38, 1024, %s40, [#allocation8], 64, 64, 4
    $region9: #{cnn_forward.1} parent=1 // pred_fallthru
      _
    // Predicated region
    $region10: #{cnn_forward.1} parent=1 // pred_check
      _
    $region11: #{cnn_forward.1} parent=1 // pred_check_branch
      %47 = sbr.rel (0) target = $region13
    $region12: #{cnn_forward.1} parent=1 // pred_region
      %49 = vsyncadd [#allocation8], 0
      %s50 = sshll.u32 %s3, 4
      %s51 = int_to_ptr.hbm [resolvable:$true] %s50
      %s52 = sshll.u32 [#allocation9], 4
      %s53 = int_to_ptr.vmem [resolvable:$true] %s52
      %58 = dma.hbm_to_vmem [thread:$0]  %s51, 1024, %s53, [#allocation8], 64, 64, 4
    $region13: #{cnn_forward.1} parent=1 // pred_fallthru
      _
    // Predicated region
    $region14: #{cnn_forward.1} parent=1 // pred_check
      _
    $region15: #{cnn_forward.1} parent=1 // pred_check_branch
      %60 = sbr.rel (0) target = $region17
    $region16: #{cnn_forward.1} parent=1 // pred_region
      _
    $region17: #{cnn_forward.1} parent=1 // pred_fallthru
      _
    // Predicated region
    $region18: #{cnn_forward.1} parent=1 // pred_check
      _
    $region19: #{cnn_forward.1} parent=1 // pred_check_branch
      %62 = sbr.rel (0) target = $region21
    $region20: #{cnn_forward.1} parent=1 // pred_region
      %64 = dma.done [#allocation6], 12800
    $region21: #{cnn_forward.1} parent=1 // pred_fallthru
      _
    // Predicated region
    $region22: #{cnn_forward.1} parent=1 // pred_check
      _
    $region23: #{cnn_forward.1} parent=1 // pred_check_branch
      %66 = sbr.rel (0) target = $region25
    $region24: #{cnn_forward.1} parent=1 // pred_region
      %68 = dma.done [#allocation8], 1024
    $region25: #{cnn_forward.1} parent=1 // pred_fallthru
      _
    // Predicated region
    $region26: #{cnn_forward.1} parent=1 // pred_check
      _
    $region27: #{cnn_forward.1} parent=1 // pred_check_branch
      %70 = sbr.rel (0) target = $region29
    $region28: #{cnn_forward.1} parent=1 // pred_region
      %72 = dma.done [#allocation8], 1024
    $region29: #{cnn_forward.1} parent=1 // pred_fallthru
      _
    %v73 = vld [vmem:[%s4] sm:$0x1]
    %v74 = vld [vmem:[%s4 + $0x1] sm:$0x1]
    %v75 = vld [vmem:[%s4 + $0x2] sm:$0x1]
    %s76 = smul.u32 0, 8
    %s77 = smul.u32 %s76, 128
    %s78 = sld [smem:[#allocation4 + %s77]]
    %s79 = scalar_lea.vmem [#allocation5], %s78
    %v80 = vld [vmem:[%s79] sm:$0x1]
    %v81 = vadd.f32 %v73, %v80
    %s82 = sadd.s32 %s77, 1
    %s83 = sld [smem:[#allocation4 + %s82]]
    %s84 = sadd.s32 %s83, 50
    %s85 = scalar_lea.vmem [#allocation5], %s84
    %v86 = vld [vmem:[%s85] sm:$0x1]
    %v87 = vadd.f32 %v81, %v86
    %s88 = sadd.s32 %s77, 2
    %s89 = sld [smem:[#allocation4 + %s88]]
    %s90 = sadd.s32 %s89, 100
    %s91 = scalar_lea.vmem [#allocation5], %s90
    %v92 = vld [vmem:[%s91] sm:$0x1]
    %v93 = vadd.f32 %v87, %v92
    %s94 = sadd.s32 %s77, 3
    %s95 = sld [smem:[#allocation4 + %s94]]
    %s96 = sadd.s32 %s95, 150
    %s97 = scalar_lea.vmem [#allocation5], %s96
    %v98 = vld [vmem:[%s97] sm:$0x1]
    %v99 = vadd.f32 %v93, %v98
    %s100 = sadd.s32 %s77, 4
    %s101 = sld [smem:[#allocation4 + %s100]]
    %s102 = sadd.s32 %s101, 200
    %s103 = scalar_lea.vmem [#allocation5], %s102
    %v104 = vld [vmem:[%s103] sm:$0x1]
    %v105 = vadd.f32 %v99, %v104
    %s106 = sadd.s32 %s77, 5
    %s107 = sld [smem:[#allocation4 + %s106]]
    %s108 = sadd.s32 %s107, 250
    %s109 = scalar_lea.vmem [#allocation5], %s108
    %v110 = vld [vmem:[%s109] sm:$0x1]
    %v111 = vadd.f32 %v105, %v110
    %s112 = sadd.s32 %s77, 6
    %s113 = sld [smem:[#allocation4 + %s112]]
    %s114 = sadd.s32 %s113, 300
    %s115 = scalar_lea.vmem [#allocation5], %s114
    %v116 = vld [vmem:[%s115] sm:$0x1]
    %v117 = vadd.f32 %v111, %v116
    %s118 = sadd.s32 %s77, 7
    %s119 = sld [smem:[#allocation4 + %s118]]
    %s120 = sadd.s32 %s119, 350
    %s121 = scalar_lea.vmem [#allocation5], %s120
    %v122 = vld [vmem:[%s121] sm:$0x1]
    %v123 = vadd.f32 %v117, %v122
    %s124 = sadd.s32 %s77, 8
    %s125 = sld [smem:[#allocation4 + %s124]]
    %s126 = sadd.s32 %s125, 400
    %s127 = scalar_lea.vmem [#allocation5], %s126
    %v128 = vld [vmem:[%s127] sm:$0x1]
    %v129 = vadd.f32 %v123, %v128
    %s130 = sadd.s32 %s77, 9
    %s131 = sld [smem:[#allocation4 + %s130]]
    %s132 = sadd.s32 %s131, 450
    %s133 = scalar_lea.vmem [#allocation5], %s132
    %v134 = vld [vmem:[%s133] sm:$0x1]
    %v135 = vadd.f32 %v129, %v134
    %s136 = sadd.s32 %s77, 10
    %s137 = sld [smem:[#allocation4 + %s136]]
    %s138 = sadd.s32 %s137, 500
    %s139 = scalar_lea.vmem [#allocation5], %s138
    %v140 = vld [vmem:[%s139] sm:$0x1]
    %v141 = vadd.f32 %v135, %v140
    %s142 = sadd.s32 %s77, 11
    %s143 = sld [smem:[#allocation4 + %s142]]
    %s144 = sadd.s32 %s143, 550
    %s145 = scalar_lea.vmem [#allocation5], %s144
    %v146 = vld [vmem:[%s145] sm:$0x1]
    %v147 = vadd.f32 %v141, %v146
    %s148 = sadd.s32 %s77, 12
    %s149 = sld [smem:[#allocation4 + %s148]]
    %s150 = sadd.s32 %s149, 600
    %s151 = scalar_lea.vmem [#allocation5], %s150
    %v152 = vld [vmem:[%s151] sm:$0x1]
    %v153 = vadd.f32 %v147, %v152
    %s154 = sadd.s32 %s77, 13
    %s155 = sld [smem:[#allocation4 + %s154]]
    %s156 = sadd.s32 %s155, 650
    %s157 = scalar_lea.vmem [#allocation5], %s156
    %v158 = vld [vmem:[%s157] sm:$0x1]
    %v159 = vadd.f32 %v153, %v158
    %s160 = sadd.s32 %s77, 14
    %s161 = sld [smem:[#allocation4 + %s160]]
    %s162 = sadd.s32 %s161, 700
    %s163 = scalar_lea.vmem [#allocation5], %s162
    %v164 = vld [vmem:[%s163] sm:$0x1]
    %v165 = vadd.f32 %v159, %v164
    %s166 = sadd.s32 %s77, 15
    %s167 = sld [smem:[#allocation4 + %s166]]
    %s168 = sadd.s32 %s167, 750
    %s169 = scalar_lea.vmem [#allocation5], %s168
    %v170 = vld [vmem:[%s169] sm:$0x1]
    %v171 = vadd.f32 %v165, %v170
    %172 = vst [vmem:[#allocation2] sm:$0x1] %v171
    %s173 = sadd.s32 %s76, 1
    %s174 = smul.u32 %s173, 128
    %s175 = sld [smem:[#allocation4 + %s174]]
    %s176 = scalar_lea.vmem [#allocation5], %s175
    %v177 = vld [vmem:[%s176] sm:$0x1]
    %v178 = vadd.f32 %v73, %v177
    %s179 = sadd.s32 %s174, 1
    %s180 = sld [smem:[#allocation4 + %s179]]
    %s181 = sadd.s32 %s180, 50
    %s182 = scalar_lea.vmem [#allocation5], %s181
    %v183 = vld [vmem:[%s182] sm:$0x1]
    %v184 = vadd.f32 %v178, %v183
    %s185 = sadd.s32 %s174, 2
    %s186 = sld [smem:[#allocation4 + %s185]]
    %s187 = sadd.s32 %s186, 100
    %s188 = scalar_lea.vmem [#allocation5], %s187
    %v189 = vld [vmem:[%s188] sm:$0x1]
    %v190 = vadd.f32 %v184, %v189
    %s191 = sadd.s32 %s174, 3
    %s192 = sld [smem:[#allocation4 + %s191]]
    %s193 = sadd.s32 %s192, 150
    %s194 = scalar_lea.vmem [#allocation5], %s193
    %v195 = vld [vmem:[%s194] sm:$0x1]
    %v196 = vadd.f32 %v190, %v195
    %s197 = sadd.s32 %s174, 4
    %s198 = sld [smem:[#allocation4 + %s197]]
    %s199 = sadd.s32 %s198, 200
    %s200 = scalar_lea.vmem [#allocation5], %s199
    %v201 = vld [vmem:[%s200] sm:$0x1]
    %v202 = vadd.f32 %v196, %v201
    %s203 = sadd.s32 %s174, 5
    %s204 = sld [smem:[#allocation4 + %s203]]
    %s205 = sadd.s32 %s204, 250
    %s206 = scalar_lea.vmem [#allocation5], %s205
    %v207 = vld [vmem:[%s206] sm:$0x1]
    %v208 = vadd.f32 %v202, %v207
    %s209 = sadd.s32 %s174, 6
    %s210 = sld [smem:[#allocation4 + %s209]]
    %s211 = sadd.s32 %s210, 300
    %s212 = scalar_lea.vmem [#allocation5], %s211
    %v213 = vld [vmem:[%s212] sm:$0x1]
    %v214 = vadd.f32 %v208, %v213
    %s215 = sadd.s32 %s174, 7
    %s216 = sld [smem:[#allocation4 + %s215]]
    %s217 = sadd.s32 %s216, 350
    %s218 = scalar_lea.vmem [#allocation5], %s217
    %v219 = vld [vmem:[%s218] sm:$0x1]
    %v220 = vadd.f32 %v214, %v219
    %s221 = sadd.s32 %s174, 8
    %s222 = sld [smem:[#allocation4 + %s221]]
    %s223 = sadd.s32 %s222, 400
    %s224 = scalar_lea.vmem [#allocation5], %s223
    %v225 = vld [vmem:[%s224] sm:$0x1]
    %v226 = vadd.f32 %v220, %v225
    %s227 = sadd.s32 %s174, 9
    %s228 = sld [smem:[#allocation4 + %s227]]
    %s229 = sadd.s32 %s228, 450
    %s230 = scalar_lea.vmem [#allocation5], %s229
    %v231 = vld [vmem:[%s230] sm:$0x1]
    %v232 = vadd.f32 %v226, %v231
    %s233 = sadd.s32 %s174, 10
    %s234 = sld [smem:[#allocation4 + %s233]]
    %s235 = sadd.s32 %s234, 500
    %s236 = scalar_lea.vmem [#allocation5], %s235
    %v237 = vld [vmem:[%s236] sm:$0x1]
    %v238 = vadd.f32 %v232, %v237
    %s239 = sadd.s32 %s174, 11
    %s240 = sld [smem:[#allocation4 + %s239]]
    %s241 = sadd.s32 %s240, 550
    %s242 = scalar_lea.vmem [#allocation5], %s241
    %v243 = vld [vmem:[%s242] sm:$0x1]
    %v244 = vadd.f32 %v238, %v243
    %s245 = sadd.s32 %s174, 12
    %s246 = sld [smem:[#allocation4 + %s245]]
    %s247 = sadd.s32 %s246, 600
    %s248 = scalar_lea.vmem [#allocation5], %s247
    %v249 = vld [vmem:[%s248] sm:$0x1]
    %v250 = vadd.f32 %v244, %v249
    %s251 = sadd.s32 %s174, 13
    %s252 = sld [smem:[#allocation4 + %s251]]
    %s253 = sadd.s32 %s252, 650
    %s254 = scalar_lea.vmem [#allocation5], %s253
    %v255 = vld [vmem:[%s254] sm:$0x1]
    %v256 = vadd.f32 %v250, %v255
    %s257 = sadd.s32 %s174, 14
    %s258 = sld [smem:[#allocation4 + %s257]]
    %s259 = sadd.s32 %s258, 700
    %s260 = scalar_lea.vmem [#allocation5], %s259
    %v261 = vld [vmem:[%s260] sm:$0x1]
    %v262 = vadd.f32 %v256, %v261
    %s263 = sadd.s32 %s174, 15
    %s264 = sld [smem:[#allocation4 + %s263]]
    %s265 = sadd.s32 %s264, 750
    %s266 = scalar_lea.vmem [#allocation5], %s265
    %v267 = vld [vmem:[%s266] sm:$0x1]
    %v268 = vadd.f32 %v262, %v267
    %269 = vst [vmem:[#allocation2 + $0x1] sm:$0x1] %v268
    %s270 = sadd.s32 %s76, 2
    %s271 = smul.u32 %s270, 128
    %s272 = sld [smem:[#allocation4 + %s271]]
    %s273 = scalar_lea.vmem [#allocation5], %s272
    %v274 = vld [vmem:[%s273] sm:$0x1]
    %v275 = vadd.f32 %v73, %v274
    %s276 = sadd.s32 %s271, 1
    %s277 = sld [smem:[#allocation4 + %s276]]
    %s278 = sadd.s32 %s277, 50
    %s279 = scalar_lea.vmem [#allocation5], %s278
    %v280 = vld [vmem:[%s279] sm:$0x1]
    %v281 = vadd.f32 %v275, %v280
    %s282 = sadd.s32 %s271, 2
    %s283 = sld [smem:[#allocation4 + %s282]]
    %s284 = sadd.s32 %s283, 100
    %s285 = scalar_lea.vmem [#allocation5], %s284
    %v286 = vld [vmem:[%s285] sm:$0x1]
    %v287 = vadd.f32 %v281, %v286
    %s288 = sadd.s32 %s271, 3
    %s289 = sld [smem:[#allocation4 + %s288]]
    %s290 = sadd.s32 %s289, 150
    %s291 = scalar_lea.vmem [#allocation5], %s290
    %v292 = vld [vmem:[%s291] sm:$0x1]
    %v293 = vadd.f32 %v287, %v292
    %s294 = sadd.s32 %s271, 4
    %s295 = sld [smem:[#allocation4 + %s294]]
    %s296 = sadd.s32 %s295, 200
    %s297 = scalar_lea.vmem [#allocation5], %s296
    %v298 = vld [vmem:[%s297] sm:$0x1]
    %v299 = vadd.f32 %v293, %v298
    %s300 = sadd.s32 %s271, 5
    %s301 = sld [smem:[#allocation4 + %s300]]
    %s302 = sadd.s32 %s301, 250
    %s303 = scalar_lea.vmem [#allocation5], %s302
    %v304 = vld [vmem:[%s303] sm:$0x1]
    %v305 = vadd.f32 %v299, %v304
    %s306 = sadd.s32 %s271, 6
    %s307 = sld [smem:[#allocation4 + %s306]]
    %s308 = sadd.s32 %s307, 300
    %s309 = scalar_lea.vmem [#allocation5], %s308
    %v310 = vld [vmem:[%s309] sm:$0x1]
    %v311 = vadd.f32 %v305, %v310
    %s312 = sadd.s32 %s271, 7
    %s313 = sld [smem:[#allocation4 + %s312]]
    %s314 = sadd.s32 %s313, 350
    %s315 = scalar_lea.vmem [#allocation5], %s314
    %v316 = vld [vmem:[%s315] sm:$0x1]
    %v317 = vadd.f32 %v311, %v316
    %s318 = sadd.s32 %s271, 8
    %s319 = sld [smem:[#allocation4 + %s318]]
    %s320 = sadd.s32 %s319, 400
    %s321 = scalar_lea.vmem [#allocation5], %s320
    %v322 = vld [vmem:[%s321] sm:$0x1]
    %v323 = vadd.f32 %v317, %v322
    %s324 = sadd.s32 %s271, 9
    %s325 = sld [smem:[#allocation4 + %s324]]
    %s326 = sadd.s32 %s325, 450
    %s327 = scalar_lea.vmem [#allocation5], %s326
    %v328 = vld [vmem:[%s327] sm:$0x1]
    %v329 = vadd.f32 %v323, %v328
    %s330 = sadd.s32 %s271, 10
    %s331 = sld [smem:[#allocation4 + %s330]]
    %s332 = sadd.s32 %s331, 500
    %s333 = scalar_lea.vmem [#allocation5], %s332
    %v334 = vld [vmem:[%s333] sm:$0x1]
    %v335 = vadd.f32 %v329, %v334
    %s336 = sadd.s32 %s271, 11
    %s337 = sld [smem:[#allocation4 + %s336]]
    %s338 = sadd.s32 %s337, 550
    %s339 = scalar_lea.vmem [#allocation5], %s338
    %v340 = vld [vmem:[%s339] sm:$0x1]
    %v341 = vadd.f32 %v335, %v340
    %s342 = sadd.s32 %s271, 12
    %s343 = sld [smem:[#allocation4 + %s342]]
    %s344 = sadd.s32 %s343, 600
    %s345 = scalar_lea.vmem [#allocation5], %s344
    %v346 = vld [vmem:[%s345] sm:$0x1]
    %v347 = vadd.f32 %v341, %v346
    %s348 = sadd.s32 %s271, 13
    %s349 = sld [smem:[#allocation4 + %s348]]
    %s350 = sadd.s32 %s349, 650
    %s351 = scalar_lea.vmem [#allocation5], %s350
    %v352 = vld [vmem:[%s351] sm:$0x1]
    %v353 = vadd.f32 %v347, %v352
    %s354 = sadd.s32 %s271, 14
    %s355 = sld [smem:[#allocation4 + %s354]]
    %s356 = sadd.s32 %s355, 700
    %s357 = scalar_lea.vmem [#allocation5], %s356
    %v358 = vld [vmem:[%s357] sm:$0x1]
    %v359 = vadd.f32 %v353, %v358
    %s360 = sadd.s32 %s271, 15
    %s361 = sld [smem:[#allocation4 + %s360]]
    %s362 = sadd.s32 %s361, 750
    %s363 = scalar_lea.vmem [#allocation5], %s362
    %v364 = vld [vmem:[%s363] sm:$0x1]
    %v365 = vadd.f32 %v359, %v364
    %366 = vst [vmem:[#allocation2 + $0x2] sm:$0x1] %v365
    %s367 = sadd.s32 %s76, 3
    %s368 = smul.u32 %s367, 128
    %s369 = sld [smem:[#allocation4 + %s368]]
    %s370 = scalar_lea.vmem [#allocation5], %s369
    %v371 = vld [vmem:[%s370] sm:$0x1]
    %v372 = vadd.f32 %v73, %v371
    %s373 = sadd.s32 %s368, 1
    %s374 = sld [smem:[#allocation4 + %s373]]
    %s375 = sadd.s32 %s374, 50
    %s376 = scalar_lea.vmem [#allocation5], %s375
    %v377 = vld [vmem:[%s376] sm:$0x1]
    %v378 = vadd.f32 %v372, %v377
    %s379 = sadd.s32 %s368, 2
    %s380 = sld [smem:[#allocation4 + %s379]]
    %s381 = sadd.s32 %s380, 100
    %s382 = scalar_lea.vmem [#allocation5], %s381
    %v383 = vld [vmem:[%s382] sm:$0x1]
    %v384 = vadd.f32 %v378, %v383
    %s385 = sadd.s32 %s368, 3
    %s386 = sld [smem:[#allocation4 + %s385]]
    %s387 = sadd.s32 %s386, 150
    %s388 = scalar_lea.vmem [#allocation5], %s387
    %v389 = vld [vmem:[%s388] sm:$0x1]
    %v390 = vadd.f32 %v384, %v389
    %s391 = sadd.s32 %s368, 4
    %s392 = sld [smem:[#allocation4 + %s391]]
    %s393 = sadd.s32 %s392, 200
    %s394 = scalar_lea.vmem [#allocation5], %s393
    %v395 = vld [vmem:[%s394] sm:$0x1]
    %v396 = vadd.f32 %v390, %v395
    %s397 = sadd.s32 %s368, 5
    %s398 = sld [smem:[#allocation4 + %s397]]
    %s399 = sadd.s32 %s398, 250
    %s400 = scalar_lea.vmem [#allocation5], %s399
    %v401 = vld [vmem:[%s400] sm:$0x1]
    %v402 = vadd.f32 %v396, %v401
    %s403 = sadd.s32 %s368, 6
    %s404 = sld [smem:[#allocation4 + %s403]]
    %s405 = sadd.s32 %s404, 300
    %s406 = scalar_lea.vmem [#allocation5], %s405
    %v407 = vld [vmem:[%s406] sm:$0x1]
    %v408 = vadd.f32 %v402, %v407
    %s409 = sadd.s32 %s368, 7
    %s410 = sld [smem:[#allocation4 + %s409]]
    %s411 = sadd.s32 %s410, 350
    %s412 = scalar_lea.vmem [#allocation5], %s411
    %v413 = vld [vmem:[%s412] sm:$0x1]
    %v414 = vadd.f32 %v408, %v413
    %s415 = sadd.s32 %s368, 8
    %s416 = sld [smem:[#allocation4 + %s415]]
    %s417 = sadd.s32 %s416, 400
    %s418 = scalar_lea.vmem [#allocation5], %s417
    %v419 = vld [vmem:[%s418] sm:$0x1]
    %v420 = vadd.f32 %v414, %v419
    %s421 = sadd.s32 %s368, 9
    %s422 = sld [smem:[#allocation4 + %s421]]
    %s423 = sadd.s32 %s422, 450
    %s424 = scalar_lea.vmem [#allocation5], %s423
    %v425 = vld [vmem:[%s424] sm:$0x1]
    %v426 = vadd.f32 %v420, %v425
    %s427 = sadd.s32 %s368, 10
    %s428 = sld [smem:[#allocation4 + %s427]]
    %s429 = sadd.s32 %s428, 500
    %s430 = scalar_lea.vmem [#allocation5], %s429
    %v431 = vld [vmem:[%s430] sm:$0x1]
    %v432 = vadd.f32 %v426, %v431
    %s433 = sadd.s32 %s368, 11
    %s434 = sld [smem:[#allocation4 + %s433]]
    %s435 = sadd.s32 %s434, 550
    %s436 = scalar_lea.vmem [#allocation5], %s435
    %v437 = vld [vmem:[%s436] sm:$0x1]
    %v438 = vadd.f32 %v432, %v437
    %s439 = sadd.s32 %s368, 12
    %s440 = sld [smem:[#allocation4 + %s439]]
    %s441 = sadd.s32 %s440, 600
    %s442 = scalar_lea.vmem [#allocation5], %s441
    %v443 = vld [vmem:[%s442] sm:$0x1]
    %v444 = vadd.f32 %v438, %v443
    %s445 = sadd.s32 %s368, 13
    %s446 = sld [smem:[#allocation4 + %s445]]
    %s447 = sadd.s32 %s446, 650
    %s448 = scalar_lea.vmem [#allocation5], %s447
    %v449 = vld [vmem:[%s448] sm:$0x1]
    %v450 = vadd.f32 %v444, %v449
    %s451 = sadd.s32 %s368, 14
    %s452 = sld [smem:[#allocation4 + %s451]]
    %s453 = sadd.s32 %s452, 700
    %s454 = scalar_lea.vmem [#allocation5], %s453
    %v455 = vld [vmem:[%s454] sm:$0x1]
    %v456 = vadd.f32 %v450, %v455
    %s457 = sadd.s32 %s368, 15
    %s458 = sld [smem:[#allocation4 + %s457]]
    %s459 = sadd.s32 %s458, 750
    %s460 = scalar_lea.vmem [#allocation5], %s459
    %v461 = vld [vmem:[%s460] sm:$0x1]
    %v462 = vadd.f32 %v456, %v461
    %463 = vst [vmem:[#allocation2 + $0x3] sm:$0x1] %v462
    %s464 = sadd.s32 %s76, 4
    %s465 = smul.u32 %s464, 128
    %s466 = sld [smem:[#allocation4 + %s465]]
    %s467 = scalar_lea.vmem [#allocation5], %s466
    %v468 = vld [vmem:[%s467] sm:$0x1]
    %v469 = vadd.f32 %v73, %v468
    %s470 = sadd.s32 %s465, 1
    %s471 = sld [smem:[#allocation4 + %s470]]
    %s472 = sadd.s32 %s471, 50
    %s473 = scalar_lea.vmem [#allocation5], %s472
    %v474 = vld [vmem:[%s473] sm:$0x1]
    %v475 = vadd.f32 %v469, %v474
    %s476 = sadd.s32 %s465, 2
    %s477 = sld [smem:[#allocation4 + %s476]]
    %s478 = sadd.s32 %s477, 100
    %s479 = scalar_lea.vmem [#allocation5], %s478
    %v480 = vld [vmem:[%s479] sm:$0x1]
    %v481 = vadd.f32 %v475, %v480
    %s482 = sadd.s32 %s465, 3
    %s483 = sld [smem:[#allocation4 + %s482]]
    %s484 = sadd.s32 %s483, 150
    %s485 = scalar_lea.vmem [#allocation5], %s484
    %v486 = vld [vmem:[%s485] sm:$0x1]
    %v487 = vadd.f32 %v481, %v486
    %s488 = sadd.s32 %s465, 4
    %s489 = sld [smem:[#allocation4 + %s488]]
    %s490 = sadd.s32 %s489, 200
    %s491 = scalar_lea.vmem [#allocation5], %s490
    %v492 = vld [vmem:[%s491] sm:$0x1]
    %v493 = vadd.f32 %v487, %v492
    %s494 = sadd.s32 %s465, 5
    %s495 = sld [smem:[#allocation4 + %s494]]
    %s496 = sadd.s32 %s495, 250
    %s497 = scalar_lea.vmem [#allocation5], %s496
    %v498 = vld [vmem:[%s497] sm:$0x1]
    %v499 = vadd.f32 %v493, %v498
    %s500 = sadd.s32 %s465, 6
    %s501 = sld [smem:[#allocation4 + %s500]]
    %s502 = sadd.s32 %s501, 300
    %s503 = scalar_lea.vmem [#allocation5], %s502
    %v504 = vld [vmem:[%s503] sm:$0x1]
    %v505 = vadd.f32 %v499, %v504
    %s506 = sadd.s32 %s465, 7
    %s507 = sld [smem:[#allocation4 + %s506]]
    %s508 = sadd.s32 %s507, 350
    %s509 = scalar_lea.vmem [#allocation5], %s508
    %v510 = vld [vmem:[%s509] sm:$0x1]
    %v511 = vadd.f32 %v505, %v510
    %s512 = sadd.s32 %s465, 8
    %s513 = sld [smem:[#allocation4 + %s512]]
    %s514 = sadd.s32 %s513, 400
    %s515 = scalar_lea.vmem [#allocation5], %s514
    %v516 = vld [vmem:[%s515] sm:$0x1]
    %v517 = vadd.f32 %v511, %v516
    %s518 = sadd.s32 %s465, 9
    %s519 = sld [smem:[#allocation4 + %s518]]
    %s520 = sadd.s32 %s519, 450
    %s521 = scalar_lea.vmem [#allocation5], %s520
    %v522 = vld [vmem:[%s521] sm:$0x1]
    %v523 = vadd.f32 %v517, %v522
    %s524 = sadd.s32 %s465, 10
    %s525 = sld [smem:[#allocation4 + %s524]]
    %s526 = sadd.s32 %s525, 500
    %s527 = scalar_lea.vmem [#allocation5], %s526
    %v528 = vld [vmem:[%s527] sm:$0x1]
    %v529 = vadd.f32 %v523, %v528
    %s530 = sadd.s32 %s465, 11
    %s531 = sld [smem:[#allocation4 + %s530]]
    %s532 = sadd.s32 %s531, 550
    %s533 = scalar_lea.vmem [#allocation5], %s532
    %v534 = vld [vmem:[%s533] sm:$0x1]
    %v535 = vadd.f32 %v529, %v534
    %s536 = sadd.s32 %s465, 12
    %s537 = sld [smem:[#allocation4 + %s536]]
    %s538 = sadd.s32 %s537, 600
    %s539 = scalar_lea.vmem [#allocation5], %s538
    %v540 = vld [vmem:[%s539] sm:$0x1]
    %v541 = vadd.f32 %v535, %v540
    %s542 = sadd.s32 %s465, 13
    %s543 = sld [smem:[#allocation4 + %s542]]
    %s544 = sadd.s32 %s543, 650
    %s545 = scalar_lea.vmem [#allocation5], %s544
    %v546 = vld [vmem:[%s545] sm:$0x1]
    %v547 = vadd.f32 %v541, %v546
    %s548 = sadd.s32 %s465, 14
    %s549 = sld [smem:[#allocation4 + %s548]]
    %s550 = sadd.s32 %s549, 700
    %s551 = scalar_lea.vmem [#allocation5], %s550
    %v552 = vld [vmem:[%s551] sm:$0x1]
    %v553 = vadd.f32 %v547, %v552
    %s554 = sadd.s32 %s465, 15
    %s555 = sld [smem:[#allocation4 + %s554]]
    %s556 = sadd.s32 %s555, 750
    %s557 = scalar_lea.vmem [#allocation5], %s556
    %v558 = vld [vmem:[%s557] sm:$0x1]
    %v559 = vadd.f32 %v553, %v558
    %560 = vst [vmem:[#allocation2 + $0x4] sm:$0x1] %v559
    %s561 = sadd.s32 %s76, 5
    %s562 = smul.u32 %s561, 128
    %s563 = sld [smem:[#allocation4 + %s562]]
    %s564 = scalar_lea.vmem [#allocation5], %s563
    %v565 = vld [vmem:[%s564] sm:$0x1]
    %v566 = vadd.f32 %v73, %v565
    %s567 = sadd.s32 %s562, 1
    %s568 = sld [smem:[#allocation4 + %s567]]
    %s569 = sadd.s32 %s568, 50
    %s570 = scalar_lea.vmem [#allocation5], %s569
    %v571 = vld [vmem:[%s570] sm:$0x1]
    %v572 = vadd.f32 %v566, %v571
    %s573 = sadd.s32 %s562, 2
    %s574 = sld [smem:[#allocation4 + %s573]]
    %s575 = sadd.s32 %s574, 100
    %s576 = scalar_lea.vmem [#allocation5], %s575
    %v577 = vld [vmem:[%s576] sm:$0x1]
    %v578 = vadd.f32 %v572, %v577
    %s579 = sadd.s32 %s562, 3
    %s580 = sld [smem:[#allocation4 + %s579]]
    %s581 = sadd.s32 %s580, 150
    %s582 = scalar_lea.vmem [#allocation5], %s581
    %v583 = vld [vmem:[%s582] sm:$0x1]
    %v584 = vadd.f32 %v578, %v583
    %s585 = sadd.s32 %s562, 4
    %s586 = sld [smem:[#allocation4 + %s585]]
    %s587 = sadd.s32 %s586, 200
    %s588 = scalar_lea.vmem [#allocation5], %s587
    %v589 = vld [vmem:[%s588] sm:$0x1]
    %v590 = vadd.f32 %v584, %v589
    %s591 = sadd.s32 %s562, 5
    %s592 = sld [smem:[#allocation4 + %s591]]
    %s593 = sadd.s32 %s592, 250
    %s594 = scalar_lea.vmem [#allocation5], %s593
    %v595 = vld [vmem:[%s594] sm:$0x1]
    %v596 = vadd.f32 %v590, %v595
    %s597 = sadd.s32 %s562, 6
    %s598 = sld [smem:[#allocation4 + %s597]]
    %s599 = sadd.s32 %s598, 300
    %s600 = scalar_lea.vmem [#allocation5], %s599
    %v601 = vld [vmem:[%s600] sm:$0x1]
    %v602 = vadd.f32 %v596, %v601
    %s603 = sadd.s32 %s562, 7
    %s604 = sld [smem:[#allocation4 + %s603]]
    %s605 = sadd.s32 %s604, 350
    %s606 = scalar_lea.vmem [#allocation5], %s605
    %v607 = vld [vmem:[%s606] sm:$0x1]
    %v608 = vadd.f32 %v602, %v607
    %s609 = sadd.s32 %s562, 8
    %s610 = sld [smem:[#allocation4 + %s609]]
    %s611 = sadd.s32 %s610, 400
    %s612 = scalar_lea.vmem [#allocation5], %s611
    %v613 = vld [vmem:[%s612] sm:$0x1]
    %v614 = vadd.f32 %v608, %v613
    %s615 = sadd.s32 %s562, 9
    %s616 = sld [smem:[#allocation4 + %s615]]
    %s617 = sadd.s32 %s616, 450
    %s618 = scalar_lea.vmem [#allocation5], %s617
    %v619 = vld [vmem:[%s618] sm:$0x1]
    %v620 = vadd.f32 %v614, %v619
    %s621 = sadd.s32 %s562, 10
    %s622 = sld [smem:[#allocation4 + %s621]]
    %s623 = sadd.s32 %s622, 500
    %s624 = scalar_lea.vmem [#allocation5], %s623
    %v625 = vld [vmem:[%s624] sm:$0x1]
    %v626 = vadd.f32 %v620, %v625
    %s627 = sadd.s32 %s562, 11
    %s628 = sld [smem:[#allocation4 + %s627]]
    %s629 = sadd.s32 %s628, 550
    %s630 = scalar_lea.vmem [#allocation5], %s629
    %v631 = vld [vmem:[%s630] sm:$0x1]
    %v632 = vadd.f32 %v626, %v631
    %s633 = sadd.s32 %s562, 12
    %s634 = sld [smem:[#allocation4 + %s633]]
    %s635 = sadd.s32 %s634, 600
    %s636 = scalar_lea.vmem [#allocation5], %s635
    %v637 = vld [vmem:[%s636] sm:$0x1]
    %v638 = vadd.f32 %v632, %v637
    %s639 = sadd.s32 %s562, 13
    %s640 = sld [smem:[#allocation4 + %s639]]
    %s641 = sadd.s32 %s640, 650
    %s642 = scalar_lea.vmem [#allocation5], %s641
    %v643 = vld [vmem:[%s642] sm:$0x1]
    %v644 = vadd.f32 %v638, %v643
    %s645 = sadd.s32 %s562, 14
    %s646 = sld [smem:[#allocation4 + %s645]]
    %s647 = sadd.s32 %s646, 700
    %s648 = scalar_lea.vmem [#allocation5], %s647
    %v649 = vld [vmem:[%s648] sm:$0x1]
    %v650 = vadd.f32 %v644, %v649
    %s651 = sadd.s32 %s562, 15
    %s652 = sld [smem:[#allocation4 + %s651]]
    %s653 = sadd.s32 %s652, 750
    %s654 = scalar_lea.vmem [#allocation5], %s653
    %v655 = vld [vmem:[%s654] sm:$0x1]
    %v656 = vadd.f32 %v650, %v655
    %657 = vst [vmem:[#allocation2 + $0x5] sm:$0x1] %v656
    %s658 = sadd.s32 %s76, 6
    %s659 = smul.u32 %s658, 128
    %s660 = sld [smem:[#allocation4 + %s659]]
    %s661 = scalar_lea.vmem [#allocation5], %s660
    %v662 = vld [vmem:[%s661] sm:$0x1]
    %v663 = vadd.f32 %v73, %v662
    %s664 = sadd.s32 %s659, 1
    %s665 = sld [smem:[#allocation4 + %s664]]
    %s666 = sadd.s32 %s665, 50
    %s667 = scalar_lea.vmem [#allocation5], %s666
    %v668 = vld [vmem:[%s667] sm:$0x1]
    %v669 = vadd.f32 %v663, %v668
    %s670 = sadd.s32 %s659, 2
    %s671 = sld [smem:[#allocation4 + %s670]]
    %s672 = sadd.s32 %s671, 100
    %s673 = scalar_lea.vmem [#allocation5], %s672
    %v674 = vld [vmem:[%s673] sm:$0x1]
    %v675 = vadd.f32 %v669, %v674
    %s676 = sadd.s32 %s659, 3
    %s677 = sld [smem:[#allocation4 + %s676]]
    %s678 = sadd.s32 %s677, 150
    %s679 = scalar_lea.vmem [#allocation5], %s678
    %v680 = vld [vmem:[%s679] sm:$0x1]
    %v681 = vadd.f32 %v675, %v680
    %s682 = sadd.s32 %s659, 4
    %s683 = sld [smem:[#allocation4 + %s682]]
    %s684 = sadd.s32 %s683, 200
    %s685 = scalar_lea.vmem [#allocation5], %s684
    %v686 = vld [vmem:[%s685] sm:$0x1]
    %v687 = vadd.f32 %v681, %v686
    %s688 = sadd.s32 %s659, 5
    %s689 = sld [smem:[#allocation4 + %s688]]
    %s690 = sadd.s32 %s689, 250
    %s691 = scalar_lea.vmem [#allocation5], %s690
    %v692 = vld [vmem:[%s691] sm:$0x1]
    %v693 = vadd.f32 %v687, %v692
    %s694 = sadd.s32 %s659, 6
    %s695 = sld [smem:[#allocation4 + %s694]]
    %s696 = sadd.s32 %s695, 300
    %s697 = scalar_lea.vmem [#allocation5], %s696
    %v698 = vld [vmem:[%s697] sm:$0x1]
    %v699 = vadd.f32 %v693, %v698
    %s700 = sadd.s32 %s659, 7
    %s701 = sld [smem:[#allocation4 + %s700]]
    %s702 = sadd.s32 %s701, 350
    %s703 = scalar_lea.vmem [#allocation5], %s702
    %v704 = vld [vmem:[%s703] sm:$0x1]
    %v705 = vadd.f32 %v699, %v704
    %s706 = sadd.s32 %s659, 8
    %s707 = sld [smem:[#allocation4 + %s706]]
    %s708 = sadd.s32 %s707, 400
    %s709 = scalar_lea.vmem [#allocation5], %s708
    %v710 = vld [vmem:[%s709] sm:$0x1]
    %v711 = vadd.f32 %v705, %v710
    %s712 = sadd.s32 %s659, 9
    %s713 = sld [smem:[#allocation4 + %s712]]
    %s714 = sadd.s32 %s713, 450
    %s715 = scalar_lea.vmem [#allocation5], %s714
    %v716 = vld [vmem:[%s715] sm:$0x1]
    %v717 = vadd.f32 %v711, %v716
    %s718 = sadd.s32 %s659, 10
    %s719 = sld [smem:[#allocation4 + %s718]]
    %s720 = sadd.s32 %s719, 500
    %s721 = scalar_lea.vmem [#allocation5], %s720
    %v722 = vld [vmem:[%s721] sm:$0x1]
    %v723 = vadd.f32 %v717, %v722
    %s724 = sadd.s32 %s659, 11
    %s725 = sld [smem:[#allocation4 + %s724]]
    %s726 = sadd.s32 %s725, 550
    %s727 = scalar_lea.vmem [#allocation5], %s726
    %v728 = vld [vmem:[%s727] sm:$0x1]
    %v729 = vadd.f32 %v723, %v728
    %s730 = sadd.s32 %s659, 12
    %s731 = sld [smem:[#allocation4 + %s730]]
    %s732 = sadd.s32 %s731, 600
    %s733 = scalar_lea.vmem [#allocation5], %s732
    %v734 = vld [vmem:[%s733] sm:$0x1]
    %v735 = vadd.f32 %v729, %v734
    %s736 = sadd.s32 %s659, 13
    %s737 = sld [smem:[#allocation4 + %s736]]
    %s738 = sadd.s32 %s737, 650
    %s739 = scalar_lea.vmem [#allocation5], %s738
    %v740 = vld [vmem:[%s739] sm:$0x1]
    %v741 = vadd.f32 %v735, %v740
    %s742 = sadd.s32 %s659, 14
    %s743 = sld [smem:[#allocation4 + %s742]]
    %s744 = sadd.s32 %s743, 700
    %s745 = scalar_lea.vmem [#allocation5], %s744
    %v746 = vld [vmem:[%s745] sm:$0x1]
    %v747 = vadd.f32 %v741, %v746
    %s748 = sadd.s32 %s659, 15
    %s749 = sld [smem:[#allocation4 + %s748]]
    %s750 = sadd.s32 %s749, 750
    %s751 = scalar_lea.vmem [#allocation5], %s750
    %v752 = vld [vmem:[%s751] sm:$0x1]
    %v753 = vadd.f32 %v747, %v752
    %754 = vst [vmem:[#allocation2 + $0x6] sm:$0x1] %v753
    %s755 = sadd.s32 %s76, 7
    %s756 = smul.u32 %s755, 128
    %s757 = sld [smem:[#allocation4 + %s756]]
    %s758 = scalar_lea.vmem [#allocation5], %s757
    %v759 = vld [vmem:[%s758] sm:$0x1]
    %v760 = vadd.f32 %v73, %v759
    %s761 = sadd.s32 %s756, 1
    %s762 = sld [smem:[#allocation4 + %s761]]
    %s763 = sadd.s32 %s762, 50
    %s764 = scalar_lea.vmem [#allocation5], %s763
    %v765 = vld [vmem:[%s764] sm:$0x1]
    %v766 = vadd.f32 %v760, %v765
    %s767 = sadd.s32 %s756, 2
    %s768 = sld [smem:[#allocation4 + %s767]]
    %s769 = sadd.s32 %s768, 100
    %s770 = scalar_lea.vmem [#allocation5], %s769
    %v771 = vld [vmem:[%s770] sm:$0x1]
    %v772 = vadd.f32 %v766, %v771
    %s773 = sadd.s32 %s756, 3
    %s774 = sld [smem:[#allocation4 + %s773]]
    %s775 = sadd.s32 %s774, 150
    %s776 = scalar_lea.vmem [#allocation5], %s775
    %v777 = vld [vmem:[%s776] sm:$0x1]
    %v778 = vadd.f32 %v772, %v777
    %s779 = sadd.s32 %s756, 4
    %s780 = sld [smem:[#allocation4 + %s779]]
    %s781 = sadd.s32 %s780, 200
    %s782 = scalar_lea.vmem [#allocation5], %s781
    %v783 = vld [vmem:[%s782] sm:$0x1]
    %v784 = vadd.f32 %v778, %v783
    %s785 = sadd.s32 %s756, 5
    %s786 = sld [smem:[#allocation4 + %s785]]
    %s787 = sadd.s32 %s786, 250
    %s788 = scalar_lea.vmem [#allocation5], %s787
    %v789 = vld [vmem:[%s788] sm:$0x1]
    %v790 = vadd.f32 %v784, %v789
    %s791 = sadd.s32 %s756, 6
    %s792 = sld [smem:[#allocation4 + %s791]]
    %s793 = sadd.s32 %s792, 300
    %s794 = scalar_lea.vmem [#allocation5], %s793
    %v795 = vld [vmem:[%s794] sm:$0x1]
    %v796 = vadd.f32 %v790, %v795
    %s797 = sadd.s32 %s756, 7
    %s798 = sld [smem:[#allocation4 + %s797]]
    %s799 = sadd.s32 %s798, 350
    %s800 = scalar_lea.vmem [#allocation5], %s799
    %v801 = vld [vmem:[%s800] sm:$0x1]
    %v802 = vadd.f32 %v796, %v801
    %s803 = sadd.s32 %s756, 8
    %s804 = sld [smem:[#allocation4 + %s803]]
    %s805 = sadd.s32 %s804, 400
    %s806 = scalar_lea.vmem [#allocation5], %s805
    %v807 = vld [vmem:[%s806] sm:$0x1]
    %v808 = vadd.f32 %v802, %v807
    %s809 = sadd.s32 %s756, 9
    %s810 = sld [smem:[#allocation4 + %s809]]
    %s811 = sadd.s32 %s810, 450
    %s812 = scalar_lea.vmem [#allocation5], %s811
    %v813 = vld [vmem:[%s812] sm:$0x1]
    %v814 = vadd.f32 %v808, %v813
    %s815 = sadd.s32 %s756, 10
    %s816 = sld [smem:[#allocation4 + %s815]]
    %s817 = sadd.s32 %s816, 500
    %s818 = scalar_lea.vmem [#allocation5], %s817
    %v819 = vld [vmem:[%s818] sm:$0x1]
    %v820 = vadd.f32 %v814, %v819
    %s821 = sadd.s32 %s756, 11
    %s822 = sld [smem:[#allocation4 + %s821]]
    %s823 = sadd.s32 %s822, 550
    %s824 = scalar_lea.vmem [#allocation5], %s823
    %v825 = vld [vmem:[%s824] sm:$0x1]
    %v826 = vadd.f32 %v820, %v825
    %s827 = sadd.s32 %s756, 12
    %s828 = sld [smem:[#allocation4 + %s827]]
    %s829 = sadd.s32 %s828, 600
    %s830 = scalar_lea.vmem [#allocation5], %s829
    %v831 = vld [vmem:[%s830] sm:$0x1]
    %v832 = vadd.f32 %v826, %v831
    %s833 = sadd.s32 %s756, 13
    %s834 = sld [smem:[#allocation4 + %s833]]
    %s835 = sadd.s32 %s834, 650
    %s836 = scalar_lea.vmem [#allocation5], %s835
    %v837 = vld [vmem:[%s836] sm:$0x1]
    %v838 = vadd.f32 %v832, %v837
    %s839 = sadd.s32 %s756, 14
    %s840 = sld [smem:[#allocation4 + %s839]]
    %s841 = sadd.s32 %s840, 700
    %s842 = scalar_lea.vmem [#allocation5], %s841
    %v843 = vld [vmem:[%s842] sm:$0x1]
    %v844 = vadd.f32 %v838, %v843
    %s845 = sadd.s32 %s756, 15
    %s846 = sld [smem:[#allocation4 + %s845]]
    %s847 = sadd.s32 %s846, 750
    %s848 = scalar_lea.vmem [#allocation5], %s847
    %v849 = vld [vmem:[%s848] sm:$0x1]
    %v850 = vadd.f32 %v844, %v849
    %851 = vst [vmem:[#allocation2 + $0x7] sm:$0x1] %v850
    %v852 = vld [vmem:[#allocation2] sm:$0xff]
    %853 = vrot.lane.b32.xlu0 %v852, 127
    %v854 = vpop.permute.xlu0 %853
    %v855 = vmax.f32 %v852, %v854
    %v856 = vpack.c.bf16 %v855, %v855
    %v857 = vld [vmem:[#allocation7] sm:$0xf]
    %v858 = vld [vmem:[#allocation7 + $0x4] sm:$0xf]
    %v859 = vld [vmem:[#allocation7 + $0x8] sm:$0xf]
    %v860 = vld [vmem:[#allocation7 + $0xc] sm:$0xf]
    %v861 = vld [vmem:[#allocation7 + $0x10] sm:$0xf]
    %v862 = vld [vmem:[#allocation7 + $0x14] sm:$0xf]
    %v863 = vld [vmem:[#allocation7 + $0x18] sm:$0xf]
    %v864 = vld [vmem:[#allocation7 + $0x1c] sm:$0xf]
    %v865 = vld [vmem:[#allocation7 + $0x20] sm:$0xf]
    %v866 = vld [vmem:[#allocation7 + $0x24] sm:$0xf]
    %v867 = vld [vmem:[#allocation7 + $0x28] sm:$0xf]
    %v868 = vld [vmem:[#allocation7 + $0x2c] sm:$0xf]
    %v869 = vld [vmem:[#allocation7 + $0x30] sm:$0xf]
    %v870 = vld [vmem:[#allocation7 + $0x34] sm:$0xf]
    %v871 = vld [vmem:[#allocation7 + $0x38] sm:$0xf]
    %v872 = vld [vmem:[#allocation7 + $0x3c] sm:$0xf]
    %v873 = vperm.slane %v74, 0
    %v890 = vunpack.c.l.b16 %v857
    %v891 = vunpack.c.l.b16 %v858
    %v892 = vunpack.c.l.b16 %v859
    %v893 = vunpack.c.l.b16 %v860
    %v894 = vunpack.c.l.b16 %v861
    %v895 = vunpack.c.l.b16 %v862
    %v896 = vunpack.c.l.b16 %v863
    %v897 = vunpack.c.l.b16 %v864
    %v898 = vunpack.c.l.b16 %v865
    %v899 = vunpack.c.l.b16 %v866
    %v900 = vunpack.c.l.b16 %v867
    %v901 = vunpack.c.l.b16 %v868
    %v902 = vunpack.c.l.b16 %v869
    %v903 = vunpack.c.l.b16 %v870
    %v904 = vunpack.c.l.b16 %v871
    %v905 = vunpack.c.l.b16 %v872
    %v906 = vpack.c.b16 %v891, %v890
    %v907 = vpack.c.b16 %v893, %v892
    %v908 = vpack.c.b16 %v895, %v894
    %v909 = vpack.c.b16 %v897, %v896
    %v910 = vpack.c.b16 %v899, %v898
    %v911 = vpack.c.b16 %v901, %v900
    %v912 = vpack.c.b16 %v903, %v902
    %v913 = vpack.c.b16 %v905, %v904
    %922 = vmatpush.bf16.msra.mxu0 %v913
    %923 = vmatpush.bf16.msra.mxu0 %v912
    %924 = vmatpush.bf16.msra.mxu0 %v911
    %925 = vmatpush.bf16.msra.mxu0 %v910
    %926 = vmatpush.bf16.msra.mxu0 %v909
    %927 = vmatpush.bf16.msra.mxu0 %v908
    %928 = vmatpush.bf16.msra.mxu0 %v907
    %929 = vmatpush.bf16.msra.mxu0 %v906
    %930 = vmatmul.bf16.gmra.mxu0 %v856
    %v931 = vpop.f32.mrf.mxu0
    %v932 = vadd.f32 %v873, %v931
    %v933 = vpop.f32.mrf.mxu0
    %934 = vdwg.mxu0
    %v935 = vmax.f32 %v932, 0.0
    %v936 = vpack.c.bf16 %v935, %v935
    %v937 = vld [vmem:[#allocation9] sm:$0xf]
    %v938 = vld [vmem:[#allocation9 + $0x4] sm:$0xf]
    %v939 = vld [vmem:[#allocation9 + $0x8] sm:$0xf]
    %v940 = vld [vmem:[#allocation9 + $0xc] sm:$0xf]
    %v941 = vld [vmem:[#allocation9 + $0x10] sm:$0xf]
    %v942 = vld [vmem:[#allocation9 + $0x14] sm:$0xf]
    %v943 = vld [vmem:[#allocation9 + $0x18] sm:$0xf]
    %v944 = vld [vmem:[#allocation9 + $0x1c] sm:$0xf]
    %v945 = vld [vmem:[#allocation9 + $0x20] sm:$0xf]
    %v946 = vld [vmem:[#allocation9 + $0x24] sm:$0xf]
    %v947 = vld [vmem:[#allocation9 + $0x28] sm:$0xf]
    %v948 = vld [vmem:[#allocation9 + $0x2c] sm:$0xf]
    %v949 = vld [vmem:[#allocation9 + $0x30] sm:$0xf]
    %v950 = vld [vmem:[#allocation9 + $0x34] sm:$0xf]
    %v951 = vld [vmem:[#allocation9 + $0x38] sm:$0xf]
    %v952 = vld [vmem:[#allocation9 + $0x3c] sm:$0xf]
    %v953 = vperm.slane %v75, 0
    %v970 = vunpack.c.l.b16 %v937
    %v971 = vunpack.c.l.b16 %v938
    %v972 = vunpack.c.l.b16 %v939
    %v973 = vunpack.c.l.b16 %v940
    %v974 = vunpack.c.l.b16 %v941
    %v975 = vunpack.c.l.b16 %v942
    %v976 = vunpack.c.l.b16 %v943
    %v977 = vunpack.c.l.b16 %v944
    %v978 = vunpack.c.l.b16 %v945
    %v979 = vunpack.c.l.b16 %v946
    %v980 = vunpack.c.l.b16 %v947
    %v981 = vunpack.c.l.b16 %v948
    %v982 = vunpack.c.l.b16 %v949
    %v983 = vunpack.c.l.b16 %v950
    %v984 = vunpack.c.l.b16 %v951
    %v985 = vunpack.c.l.b16 %v952
    %v986 = vpack.c.b16 %v971, %v970
    %v987 = vpack.c.b16 %v973, %v972
    %v988 = vpack.c.b16 %v975, %v974
    %v989 = vpack.c.b16 %v977, %v976
    %v990 = vpack.c.b16 %v979, %v978
    %v991 = vpack.c.b16 %v981, %v980
    %v992 = vpack.c.b16 %v983, %v982
    %v993 = vpack.c.b16 %v985, %v984
    %1002 = vmatpush.bf16.msra.mxu0 %v993
    %1003 = vmatpush.bf16.msra.mxu0 %v992
    %1004 = vmatpush.bf16.msra.mxu0 %v991
    %1005 = vmatpush.bf16.msra.mxu0 %v990
    %1006 = vmatpush.bf16.msra.mxu0 %v989
    %1007 = vmatpush.bf16.msra.mxu0 %v988
    %1008 = vmatpush.bf16.msra.mxu0 %v987
    %1009 = vmatpush.bf16.msra.mxu0 %v986
    %1010 = vmatmul.bf16.gmra.mxu0 %v936
    %v1011 = vpop.f32.mrf.mxu0
    %v1012 = vadd.f32 %v953, %v1011
    %v1013 = vpop.f32.mrf.mxu0
    %1014 = vdwg.mxu0
    %v1015 = vsub.f32 0.0, %v1012
    %v1016 = vmul.f32 %v1015, 1.442695
    %v1017 = vpow.pop %v1016
    %v1018 = vadd.f32 %v1017, 1.0
    %v1019 = vrcp.pop %v1018
    %v1020 = vpack.c.bf16 %v1019, %v1019
    %1021 = vst [vmem:[%s5] sm:$0xf] %v1020
    // Predicated region
    $region30: #{cnn_forward.1} parent=1 // pred_check
      _
    $region31: #{cnn_forward.1} parent=1 // pred_check_branch
      %1023 = sbr.rel (0) target = $region33
    $region32: #{cnn_forward.1} parent=1 // pred_region
      _
    $region33: #{cnn_forward.1} parent=1 // pred_fallthru
      _
    // Predicated region
    $region34: #{cnn_forward.1} parent=1 // pred_check
      _
    $region35: #{cnn_forward.1} parent=1 // pred_check_branch
      %1025 = sbr.rel (0) target = $region37
    $region36: #{cnn_forward.1} parent=1 // pred_region
      _
    $region37: #{cnn_forward.1} parent=1 // pred_fallthru
      _
    %1026 = vsyncpa [#allocation6], 1
    %1027 = vsyncpa [#allocation8], 1

</llo_original>
